<compile_context>
chip_gen: v5e
topology: v5e:2x2
jax: 0.10.0
libtpu: 0.0.40
codegen_flags: <defaults>
</compile_context>

<pallas_src>
import jax
import jax.numpy as jnp
from jax.experimental import pallas as pl
from jax.experimental.pallas import tpu as pltpu


def _glu_kernel(x_ref, w_ref, b_ref, o_ref):
    # x_ref: (tm, D)        activations (f32 or bf16)
    # w_ref: (D, 2*tn)      fused weight panel [W1_j | W2_j]
    # b_ref: (1, 2*tn)      fused bias panel   [b1_j | b2_j] (f32)
    # o_ref: (tm, tn)       output tile
    tn = o_ref.shape[-1]
    y = jnp.dot(x_ref[...], w_ref[...], preferred_element_type=jnp.float32)
    y = y + b_ref[...].astype(jnp.float32)
    gate = jax.nn.sigmoid(y[:, :tn])     # gate branch (f32 epilogue)
    lin = y[:, tn:]                      # linear branch
    o_ref[...] = (gate * lin).astype(o_ref.dtype)


def _round_up(n, m):
    return -(-n // m) * m


def _pick_tile_n(d, tn):
    """Pick an N tile: a multiple of 128 that divides d, else the full width d."""
    tn = min(tn, d)
    if tn == d:
        return d
    tn = (tn // 128) * 128
    while tn > 0:
        if d % tn == 0:
            return tn
        tn -= 128
    return d


def glu_pallas(x, w1, b1, w2, b2, *, tm=256, tn=512, compute_dtype=None,
               vmem_limit_bytes=64 * 1024 * 1024):
    """GLU forward: sigmoid(x @ w1 + b1) * (x @ w2 + b2).

    x: (..., D); w1, w2: (D, D) stored as (in, out); b1, b2: (D,).
    compute_dtype: optional matmul dtype (e.g. jnp.bfloat16); accumulation,
    bias add and the sigmoid/multiply epilogue always run in float32.
    """
    orig_shape = x.shape
    out_dtype = x.dtype
    D = orig_shape[-1]
    x2 = x.reshape(-1, D)
    M = x2.shape[0]

    # --- tile selection -----------------------------------------------------
    tn_eff = _pick_tile_n(D, tn)
    n_n = D // tn_eff
    tm_eff = min(tm, _round_up(M, 8))
    tm_eff = max(8, (tm_eff // 8) * 8)
    M_pad = _round_up(M, tm_eff)
    n_m = M_pad // tm_eff

    if M_pad != M:
        x2 = jnp.pad(x2, ((0, M_pad - M), (0, 0)))

    # --- fuse the two Linear layers into one interleaved weight --------------
    # Slab j of w_cat (columns [2*j*tn, 2*(j+1)*tn)) is [W1 panel j | W2 panel j],
    # so each grid step does a single MXU matmul that produces both branches.
    w1r = w1.reshape(D, n_n, tn_eff)
    w2r = w2.reshape(D, n_n, tn_eff)
    w_cat = jnp.concatenate([w1r, w2r], axis=-1).reshape(D, 2 * D)
    b1r = b1.reshape(n_n, tn_eff)
    b2r = b2.reshape(n_n, tn_eff)
    b_cat = jnp.concatenate([b1r, b2r], axis=-1).reshape(1, 2 * D).astype(jnp.float32)

    if compute_dtype is not None:
        x2 = x2.astype(compute_dtype)
        w_cat = w_cat.astype(compute_dtype)

    cost = pl.CostEstimate(
        flops=4 * M_pad * D * D + 2 * M_pad * D,
        transcendentals=M_pad * D,
        bytes_accessed=(x2.size * x2.dtype.itemsize
                        + w_cat.size * w_cat.dtype.itemsize
                        + b_cat.size * b_cat.dtype.itemsize
                        + M_pad * D * jnp.dtype(out_dtype).itemsize),
    )

    out = pl.pallas_call(
        _glu_kernel,
        out_shape=jax.ShapeDtypeStruct((M_pad, D), out_dtype),
        grid_spec=pltpu.PrefetchScalarGridSpec(
            num_scalar_prefetch=0,
            grid=(n_m, n_n),
            in_specs=[
                # x row tile: block index constant over the inner N axis, so
                # it is only DMA'd once per row tile.
                pl.BlockSpec((tm_eff, D), lambda i, j: (i, 0)),
                # fused weight panel [W1_j | W2_j], streamed over j.
                pl.BlockSpec((D, 2 * tn_eff), lambda i, j: (0, j)),
                # fused bias panel.
                pl.BlockSpec((1, 2 * tn_eff), lambda i, j: (0, j)),
            ],
            out_specs=pl.BlockSpec((tm_eff, tn_eff), lambda i, j: (i, j)),
        ),
        compiler_params=pltpu.CompilerParams(
            dimension_semantics=("parallel", "parallel"),
            vmem_limit_bytes=vmem_limit_bytes,
        ),
        cost_estimate=cost,
    )(x2, w_cat, b_cat)

    if M_pad != M:
        out = out[:M]
    return out.reshape(orig_shape)


def init_glu_params(key, input_dim, dtype=jnp.float32):
    """Deterministic init mimicking nn.Linear defaults (uniform +/- 1/sqrt(fan_in))."""
    k1, k2, k3, k4 = jax.random.split(key, 4)
    bound = 1.0 / (input_dim ** 0.5)
    # Stored as (in, out) so the kernel does x @ W (equivalent to PyTorch x @ W.T).
    w1 = jax.random.uniform(k1, (input_dim, input_dim), dtype, -bound, bound)
    b1 = jax.random.uniform(k2, (input_dim,), dtype, -bound, bound)
    w2 = jax.random.uniform(k3, (input_dim, input_dim), dtype, -bound, bound)
    b2 = jax.random.uniform(k4, (input_dim,), dtype, -bound, bound)
    return w1, b1, w2, b2


def glu_reference(x, w1, b1, w2, b2):
    gate = jax.nn.sigmoid(x @ w1 + b1)
    lin = x @ w2 + b2
    return gate * lin


if __name__ == "__main__":
    key = jax.random.PRNGKey(0)

    # Main test: lane-aligned feature dim (multiple of 128), multi-tile grid
    # along both rows (tm=256 -> 2 row tiles) and N (tn=128 -> 2 panels).
    batch, seq, hidden = 4, 128, 256
    kx, kp = jax.random.split(key)
    x = jax.random.normal(kx, (batch, seq, hidden), jnp.float32)
    w1, b1, w2, b2 = init_glu_params(kp, hidden)

    out = glu_pallas(x, w1, b1, w2, b2, tm=256, tn=128)
    out = jax.block_until_ready(out)
    ref = glu_reference(x, w1, b1, w2, b2)
    assert out.shape == x.shape
    assert jnp.allclose(out, ref, atol=1e-3, rtol=1e-3), "f32 mismatch vs reference"

    # bf16 matmul path (f32 accumulation + f32 epilogue).
    out_bf16 = glu_pallas(x, w1, b1, w2, b2, tm=256, tn=128,
                          compute_dtype=jnp.bfloat16)
    out_bf16 = jax.block_until_ready(out_bf16)
    assert jnp.allclose(out_bf16, ref, atol=5e-2, rtol=5e-2), "bf16 mismatch vs reference"

    # Small, module-scale shape (exercises row padding + full-width blocks).
    batch2, seq2, hidden2 = 2, 8, 32
    kx2, kp2 = jax.random.split(jax.random.PRNGKey(1))
    x_small = jax.random.normal(kx2, (batch2, seq2, hidden2), jnp.float32)
    p_small = init_glu_params(kp2, hidden2)
    out_small = jax.block_until_ready(glu_pallas(x_small, *p_small))
    ref_small = glu_reference(x_small, *p_small)
    assert out_small.shape == x_small.shape
    assert jnp.allclose(out_small, ref_small, atol=1e-3, rtol=1e-3), "small-shape mismatch"

    print("KERNEL_OK")
</pallas_src>

<mosaic_0001>
module attributes {stable_mosaic.version = 11 : i64} {
  func.func @_glu_kernel(%arg0: i32, %arg1: i32, %arg2: memref<256x256xf32, #tpu.memory_space<vmem>>, %arg3: memref<256x256xf32, #tpu.memory_space<vmem>>, %arg4: memref<1x256xf32, #tpu.memory_space<vmem>>, %arg5: memref<256x128xf32, #tpu.memory_space<vmem>>) attributes {dimension_semantics = [#tpu.dimension_semantics<parallel>, #tpu.dimension_semantics<parallel>], iteration_bounds = array<i64: 2, 2>, scalar_prefetch = 0 : i64, scratch_operands = 0 : i64, tpu.core_type = #tpu.core_type<tc>, window_params = [{transform_indices = @transform_0, window_bounds = array<i64: 256, 256>}, {transform_indices = @transform_1, window_bounds = array<i64: 256, 256>}, {transform_indices = @transform_2, window_bounds = array<i64: 1, 256>}, {transform_indices = @transform_3, window_bounds = array<i64: 256, 128>}]} {
    %c0 = arith.constant 0 : index
    %c0_0 = arith.constant 0 : index
    %0 = vector.load %arg2[%c0, %c0_0] : memref<256x256xf32, #tpu.memory_space<vmem>>, vector<256x256xf32>
    %c0_1 = arith.constant 0 : index
    %c0_2 = arith.constant 0 : index
    %1 = vector.load %arg3[%c0_1, %c0_2] : memref<256x256xf32, #tpu.memory_space<vmem>>, vector<256x256xf32>
    %cst = arith.constant dense<0.000000e+00> : vector<256x256xf32>
    %2 = tpu.matmul %0, %1, %cst {dimension_numbers = #tpu.dot_dimension_numbers<[1], [0], [0], [1], [0, 0, 1, 1], [], []>} : vector<256x256xf32>, vector<256x256xf32>, vector<256x256xf32> -> vector<256x256xf32>
    %c0_3 = arith.constant 0 : index
    %c0_4 = arith.constant 0 : index
    %3 = vector.load %arg4[%c0_3, %c0_4] : memref<1x256xf32, #tpu.memory_space<vmem>>, vector<1x256xf32>
    %4 = vector.broadcast %3 : vector<1x256xf32> to vector<256x256xf32>
    %5 = arith.addf %2, %4 : vector<256x256xf32>
    %6 = vector.extract_strided_slice %5 {offsets = [0, 0], sizes = [256, 128], strides = [1, 1]} : vector<256x256xf32> to vector<256x128xf32>
    %7 = arith.negf %6 : vector<256x128xf32>
    %8 = math.exp %7 : vector<256x128xf32>
    %cst_5 = arith.constant 1.000000e+00 : f32
    %9 = vector.broadcast %cst_5 : f32 to vector<256x128xf32>
    %10 = arith.addf %9, %8 : vector<256x128xf32>
    %11 = arith.divf %9, %10 : vector<256x128xf32>
    %12 = vector.extract_strided_slice %5 {offsets = [0, 128], sizes = [256, 128], strides = [1, 1]} : vector<256x256xf32> to vector<256x128xf32>
    %13 = arith.mulf %11, %12 : vector<256x128xf32>
    %c0_6 = arith.constant 0 : index
    %c0_7 = arith.constant 0 : index
    %14 = vector.load %arg5[%c0_6, %c0_7] : memref<256x128xf32, #tpu.memory_space<vmem>>, vector<256x128xf32>
    tpu.vector_store %arg5[%c0_6, %c0_7], %13 {strides = array<i32>} : memref<256x128xf32, #tpu.memory_space<vmem>>, vector<256x128xf32>,
    return
  }
  func.func @transform_0(%arg0: i32, %arg1: i32) -> (i32, i32) {
    %c0_i32 = arith.constant 0 : i32
    %c0_i32_0 = arith.constant 0 : i32
    return %arg0, %c0_i32 : i32, i32
  }
  func.func @transform_1(%arg0: i32, %arg1: i32) -> (i32, i32) {
    %c0_i32 = arith.constant 0 : i32
    %c0_i32_0 = arith.constant 0 : i32
    return %c0_i32, %arg1 : i32, i32
  }
  func.func @transform_2(%arg0: i32, %arg1: i32) -> (i32, i32) {
    %c0_i32 = arith.constant 0 : i32
    %c0_i32_0 = arith.constant 0 : i32
    return %c0_i32, %arg1 : i32, i32
  }
  func.func @transform_3(%arg0: i32, %arg1: i32) -> (i32, i32) {
    %c0_i32 = arith.constant 0 : i32
    return %arg0, %arg1 : i32, i32
  }
}

</mosaic_0001>

<llo_original>
// kernel: tpu_custom_call.1
$region0: #{tpu_custom_call.1}
  #allocation0 [shape = 'u32[]', space=smem, size = 0x4, offset = 0x4, fixed_abs, tag = 'smem constant byte address 0x4 - core index']
  #allocation1 [shape = 'u32[72,128]{1,0:T(1,128)}', space=vmem, size = 0x9000, scoped, tag = 'internal scratch']
  %s0 = inlined_call_operand.hbm [shape: f32[512,256], index: 0, kind: input, shape index: {}]
  %s1 = inlined_call_operand.hbm [shape: f32[256,512], index: 1, kind: input, shape index: {}]
  %s2 = inlined_call_operand.hbm [shape: f32[1,512], index: 2, kind: input, shape index: {}]
  %s3 = inlined_call_operand.hbm [shape: f32[512,256], index: 3, kind: output, shape index: {}]
  %s4 = sld [smem:[#allocation0]]
  $region57: #{tpu_custom_call.1} parent=0
    _
  %s6 = ssub.s32 1, %s4
  %s7 = scalar_select 0, %s6, %s4
  $region1: #{tpu_custom_call.1} parent=0
    #allocation2 [shape = 'u8[524288]{0}', space=vmem, size = 0x80000, scoped, tag = 'input window, operand 0']
    #allocation3 [shape = 's32[2]{0}', space=sflag, size = 0x8, scoped, tag = 'scoped memory for tpu_custom_call.1']
    #allocation4 [shape = 's32[2]{0}', space=sflag, size = 0x8, scoped, tag = 'scoped memory for tpu_custom_call.1']
    #allocation5 [shape = 'u8[524288]{0}', space=vmem, size = 0x80000, scoped, tag = 'input window, operand 1']
    #allocation6 [shape = 's32[2]{0}', space=sflag, size = 0x8, scoped, tag = 'scoped memory for tpu_custom_call.1']
    #allocation7 [shape = 'u8[2048]{0}', space=vmem, size = 0x800, scoped, tag = 'input window, operand 2']
    #allocation8 [shape = 'u8[262144]{0}', space=vmem, size = 0x40000, scoped, tag = 'output window, operand 0']
    %8 = vsyncpa [#allocation3], 0
    %s9 = scalar_lea.sflag [#allocation3], 1
    %10 = vsyncpa %s9, 0
    %11 = vsyncpa [#allocation6], 0
    %s12 = scalar_lea.sflag [#allocation6], 1
    %13 = vsyncpa %s12, 0
    %14 = vsyncpa [#allocation4], 0
    %s15 = scalar_lea.sflag [#allocation4], 1
    %16 = vsyncpa %s15, 0
    loop: start=0, step=1, limit=6
    $region2: #{tpu_custom_call.1} parent=1 // loop_pre_header
      _
    $region3: #{tpu_custom_call.1} parent=1 // loop_header
      %s18 = sphi 0, %s22
      %p19 = scmp.ge.s32.totalorder %s18, 6
      %s25 = sphi 0, %s37
      %s26 = sphi 0, %s33
      %s27 = sphi 0, %s25
      %s28 = sphi 0, %s26
      %s29 = sphi 0, %s27
      %s30 = sphi 0, %s28
      %s40 = sphi 0, %s42
      %s43 = sphi 0, %s40
      %s44 = sphi 0, %s43
      %s60 = sphi 0, %s44
      %s66 = sphi 0, %s68
      %s69 = sphi 0, %s66
      %s70 = sphi 0, %s69
      %s86 = sphi 0, %s70
      %s92 = sphi 0, %s94
      %s95 = sphi 0, %s92
      %s96 = sphi 0, %s95
      %s112 = sphi 0, %s96
      %s120 = sphi 0, %s122
      %s123 = sphi 0, %s120
      %s124 = sphi 0, %s123
      %s140 = sphi 0, %s124
    $region4: #{tpu_custom_call.1} parent=1 // loop_header_branch
      %21 = sbr.rel (%p19) target = $region8
    $region5: #{tpu_custom_call.1} parent=1 // loop_body
      %s23 = ssub.s32 %s18, 1
      %s24 = ssub.s32 %s18, 2
      %s31 = sadd.s32 1, %s26
      %p32 = scmp.ge.s32.totalorder %s31, 2
      %s33 = scalar_select %p32, 0, %s31
      %s34 = sadd.s32 1, %s25
      %s35 = scalar_select %p32, %s34, %s25
      %p36 = scmp.ge.s32.totalorder %s35, 2
      %s37 = scalar_select %p36, 0, %s35
      %s38 = ssub.s32 %s25, %s37
      %p39 = scmp.eq.s32.totalorder %s38, 0
      %s41 = sadd.s32 %s40, 1
      %s42 = scalar_select %p39, %s40, %s41
      %p45 = pneg %p39
      %p46 = scmp.eq.s32.totalorder %s18, 3
      %p47 = por %p45, %p46
      %p48 = scmp.ne.s32.totalorder %s40, %s43
      %p49 = scmp.eq.s32.totalorder %s18, 0
      %p50 = por %p48, %p49
      %p51 = scmp.ne.s32.totalorder %s40, %s43
      %p52 = scmp.eq.s32.totalorder %s23, 3
      %p53 = por %p51, %p52
      %p54 = scmp.ne.s32.totalorder %s43, %s44
      %p55 = scmp.eq.s32.totalorder %s23, 0
      %p56 = por %p54, %p55
      %p57 = scmp.ne.s32.totalorder %s43, %s44
      %p58 = scmp.eq.s32.totalorder %s24, 3
      %p59 = por %p57, %p58
      %p61 = scmp.ne.s32.totalorder %s44, %s60
      %p62 = scmp.eq.s32.totalorder %s24, 0
      %p63 = por %p61, %p62
      %s64 = ssub.s32 %s26, %s33
      %p65 = scmp.eq.s32.totalorder %s64, 0
      %s67 = sadd.s32 %s66, 1
      %s68 = scalar_select %p65, %s66, %s67
      %p71 = pneg %p65
      %p72 = scmp.eq.s32.totalorder %s18, 3
      %p73 = por %p71, %p72
      %p74 = scmp.ne.s32.totalorder %s66, %s69
      %p75 = scmp.eq.s32.totalorder %s18, 0
      %p76 = por %p74, %p75
      %p77 = scmp.ne.s32.totalorder %s66, %s69
      %p78 = scmp.eq.s32.totalorder %s23, 3
      %p79 = por %p77, %p78
      %p80 = scmp.ne.s32.totalorder %s69, %s70
      %p81 = scmp.eq.s32.totalorder %s23, 0
      %p82 = por %p80, %p81
      %p83 = scmp.ne.s32.totalorder %s69, %s70
      %p84 = scmp.eq.s32.totalorder %s24, 3
      %p85 = por %p83, %p84
      %p87 = scmp.ne.s32.totalorder %s70, %s86
      %p88 = scmp.eq.s32.totalorder %s24, 0
      %p89 = por %p87, %p88
      %s90 = ssub.s32 %s26, %s33
      %p91 = scmp.eq.s32.totalorder %s90, 0
      %s93 = sadd.s32 %s92, 1
      %s94 = scalar_select %p91, %s92, %s93
      %p97 = pneg %p91
      %p98 = scmp.eq.s32.totalorder %s18, 3
      %p99 = por %p97, %p98
      %p100 = scmp.ne.s32.totalorder %s92, %s95
      %p101 = scmp.eq.s32.totalorder %s18, 0
      %p102 = por %p100, %p101
      %p103 = scmp.ne.s32.totalorder %s92, %s95
      %p104 = scmp.eq.s32.totalorder %s23, 3
      %p105 = por %p103, %p104
      %p106 = scmp.ne.s32.totalorder %s95, %s96
      %p107 = scmp.eq.s32.totalorder %s23, 0
      %p108 = por %p106, %p107
      %p109 = scmp.ne.s32.totalorder %s95, %s96
      %p110 = scmp.eq.s32.totalorder %s24, 3
      %p111 = por %p109, %p110
      %p113 = scmp.ne.s32.totalorder %s96, %s112
      %p114 = scmp.eq.s32.totalorder %s24, 0
      %p115 = por %p113, %p114
      %s116 = ssub.s32 %s25, %s37
      %s117 = ssub.s32 %s26, %s33
      %s118 = sor.u32 %s116, %s117
      %p119 = scmp.eq.s32.totalorder %s118, 0
      %s121 = sadd.s32 %s120, 1
      %s122 = scalar_select %p119, %s120, %s121
      %p125 = pneg %p119
      %p126 = scmp.eq.s32.totalorder %s18, 3
      %p127 = por %p125, %p126
      %p128 = scmp.ne.s32.totalorder %s120, %s123
      %p129 = scmp.eq.s32.totalorder %s18, 0
      %p130 = por %p128, %p129
      %p131 = scmp.ne.s32.totalorder %s120, %s123
      %p132 = scmp.eq.s32.totalorder %s23, 3
      %p133 = por %p131, %p132
      %p134 = scmp.ne.s32.totalorder %s123, %s124
      %p135 = scmp.eq.s32.totalorder %s23, 0
      %p136 = por %p134, %p135
      %p137 = scmp.ne.s32.totalorder %s123, %s124
      %p138 = scmp.eq.s32.totalorder %s24, 3
      %p139 = por %p137, %p138
      %p141 = scmp.ne.s32.totalorder %s124, %s140
      %p142 = scmp.eq.s32.totalorder %s24, 0
      %p143 = por %p141, %p142
      %p144 = scmp.le.s32.totalorder 1, %s18
      %p145 = scmp.lt.s32.totalorder %s18, 5
      %p146 = pnand %p144, %p145
      %p147 = pneg %p146
      // Predicated region
      $region9: #{tpu_custom_call.1} parent=5 // pred_check
        _
      $region10: #{tpu_custom_call.1} parent=5 // pred_check_branch
        %149 = sbr.rel (%p146) target = $region12
      $region11: #{tpu_custom_call.1} parent=5 // pred_region
        %s150 = ssub.s32 %s18, 1
      $region12: #{tpu_custom_call.1} parent=5 // pred_fallthru
        _
      %p151 = scmp.lt.s32.totalorder %s18, 4
      // Predicated region
      $region13: #{tpu_custom_call.1} parent=5 // pred_check
        %p152 = pneg %p151
      $region14: #{tpu_custom_call.1} parent=5 // pred_check_branch
        %154 = sbr.rel (%p152) target = $region16
      $region15: #{tpu_custom_call.1} parent=5 // pred_region
        // Predicated region
        $region17: #{tpu_custom_call.1} parent=15 // pred_check
          %p155 = pneg %p50
        $region18: #{tpu_custom_call.1} parent=15 // pred_check_branch
          %157 = sbr.rel (%p155) target = $region20
        $region19: #{tpu_custom_call.1} parent=15 // pred_region
          %s158 = sand.u32 %s40, 1
          %s159 = scalar_lea.sflag [#allocation3], %s158
          %s160 = sand.u32 %s40, 1
          %s161 = smul.addr %s160, 512
          %s162 = scalar_lea.vmem [#allocation2], %s161
          %s163 = smul.u32 32, %s25
          %165 = vsyncadd %s159, 0
          %s166 = smul.addr %s163, 2
          %s167 = smul.addr %s166, 8
          %s168 = scalar_lea.hbm %s0, %s167
          %s169 = sshll.u32 %s168, 4
          %s170 = int_to_ptr.hbm [resolvable:$true] %s169
          %s171 = sshll.u32 %s162, 4
          %s172 = int_to_ptr.vmem [resolvable:$true] %s171
          %177 = dma.hbm_to_vmem [thread:$0]  %s170, 8192, %s172, %s159, 256, 256, 16
        $region20: #{tpu_custom_call.1} parent=15 // pred_fallthru
          _
        // Predicated region
        $region21: #{tpu_custom_call.1} parent=15 // pred_check
          %p178 = pneg %p76
        $region22: #{tpu_custom_call.1} parent=15 // pred_check_branch
          %180 = sbr.rel (%p178) target = $region24
        $region23: #{tpu_custom_call.1} parent=15 // pred_region
          %s181 = sand.u32 %s18, 1
          %s182 = scalar_lea.sflag [#allocation6], %s181
          %s183 = sand.u32 %s66, 1
          %s184 = smul.addr %s183, 512
          %s185 = scalar_lea.vmem [#allocation5], %s184
          %s186 = smul.u32 2, %s26
          %188 = vsyncadd %s182, 0
          %s189 = smul.addr %s186, 8
          %s190 = scalar_lea.hbm %s1, %s189
          %s191 = sshll.u32 %s190, 4
          %s192 = int_to_ptr.hbm [resolvable:$true] %s191
          %s193 = sshll.u32 %s185, 4
          %s194 = int_to_ptr.vmem [resolvable:$true] %s193
          %199 = dma.hbm_to_vmem [thread:$0]  %s192, 8192, %s194, %s182, 512, 256, 16
        $region24: #{tpu_custom_call.1} parent=15 // pred_fallthru
          _
        // Predicated region
        $region25: #{tpu_custom_call.1} parent=15 // pred_check
          %p200 = pneg %p102
        $region26: #{tpu_custom_call.1} parent=15 // pred_check_branch
          %202 = sbr.rel (%p200) target = $region28
        $region27: #{tpu_custom_call.1} parent=15 // pred_region
          %s203 = sand.u32 %s18, 1
          %s204 = scalar_lea.sflag [#allocation6], %s203
          %s205 = sand.u32 %s92, 1
          %s206 = smul.addr %s205, 2
          %s207 = scalar_lea.vmem [#allocation7], %s206
          %s208 = smul.u32 2, %s26
          %210 = vsyncadd %s204, 0
          %s211 = scalar_lea.hbm %s2, %s208
          %s213 = sshll.u32 %s211, 4
          %s214 = int_to_ptr.hbm [resolvable:$true] %s213
          %s215 = sshll.u32 %s207, 4
          %s216 = int_to_ptr.vmem [resolvable:$true] %s215
          %218 = dma.hbm_to_vmem [thread:$0]  %s214, 32, %s216, %s204
        $region28: #{tpu_custom_call.1} parent=15 // pred_fallthru
          _
      $region16: #{tpu_custom_call.1} parent=5 // pred_fallthru
        _
      %p219 = scmp.le.s32.totalorder 1, %s18
      %p220 = scmp.lt.s32.totalorder %s18, 5
      %p221 = pnand %p219, %p220
      %p222 = pneg %p221
      // Predicated region
      $region29: #{tpu_custom_call.1} parent=5 // pred_check
        _
      $region30: #{tpu_custom_call.1} parent=5 // pred_check_branch
        %224 = sbr.rel (%p221) target = $region32
      $region31: #{tpu_custom_call.1} parent=5 // pred_region
        %s225 = ssub.s32 %s18, 1
        %s226 = sand.u32 %s43, 1
        %s227 = scalar_lea.sflag [#allocation3], %s226
        %s228 = sand.u32 %s43, 1
        %s229 = smul.addr %s228, 512
        %s230 = scalar_lea.vmem [#allocation2], %s229
        // Predicated region
        $region33: #{tpu_custom_call.1} parent=31 // pred_check
          %p231 = pneg %p56
        $region34: #{tpu_custom_call.1} parent=31 // pred_check_branch
          %233 = sbr.rel (%p231) target = $region36
        $region35: #{tpu_custom_call.1} parent=31 // pred_region
          %235 = dma.done %s227, 8192
        $region36: #{tpu_custom_call.1} parent=31 // pred_fallthru
          _
        %s236 = sand.u32 %s23, 1
        %s237 = scalar_lea.sflag [#allocation6], %s236
        %s238 = sand.u32 %s69, 1
        %s239 = smul.addr %s238, 512
        %s240 = scalar_lea.vmem [#allocation5], %s239
        // Predicated region
        $region37: #{tpu_custom_call.1} parent=31 // pred_check
          %p241 = pneg %p82
        $region38: #{tpu_custom_call.1} parent=31 // pred_check_branch
          %243 = sbr.rel (%p241) target = $region40
        $region39: #{tpu_custom_call.1} parent=31 // pred_region
          %245 = dma.done %s237, 8192
        $region40: #{tpu_custom_call.1} parent=31 // pred_fallthru
          _
        %s246 = sand.u32 %s23, 1
        %s247 = scalar_lea.sflag [#allocation6], %s246
        %s248 = sand.u32 %s95, 1
        %s249 = smul.addr %s248, 2
        %s250 = scalar_lea.vmem [#allocation7], %s249
        // Predicated region
        $region41: #{tpu_custom_call.1} parent=31 // pred_check
          %p251 = pneg %p108
        $region42: #{tpu_custom_call.1} parent=31 // pred_check_branch
          %253 = sbr.rel (%p251) target = $region44
        $region43: #{tpu_custom_call.1} parent=31 // pred_region
          %255 = dma.done %s247, 32
        $region44: #{tpu_custom_call.1} parent=31 // pred_fallthru
          _
        %s256 = sand.u32 %s43, 1
        %s257 = scalar_lea.sflag [#allocation3], %s256
        %s258 = sand.u32 %s43, 1
        %s259 = smul.addr %s258, 512
        %s260 = scalar_lea.vmem [#allocation2], %s259
        %p261 = pneg %p56
        %p262 = pneg %p53
        %s263 = sand.u32 %s23, 1
        %s264 = scalar_lea.sflag [#allocation6], %s263
        %s265 = sand.u32 %s69, 1
        %s266 = smul.addr %s265, 512
        %s267 = scalar_lea.vmem [#allocation5], %s266
        %p268 = pneg %p82
        %p269 = pneg %p79
        %s270 = sand.u32 %s23, 1
        %s271 = scalar_lea.sflag [#allocation6], %s270
        %s272 = sand.u32 %s95, 1
        %s273 = smul.addr %s272, 2
        %s274 = scalar_lea.vmem [#allocation7], %s273
        %p275 = pneg %p108
        %p276 = pneg %p105
        %p277 = pneg %p136
        %p278 = pneg %p133
        %s279 = sand.u32 %s123, 1
        %s280 = scalar_lea.sflag [#allocation4], %s279
        %s281 = sand.u32 %s123, 1
        %s282 = smul.addr %s281, 256
        %s283 = scalar_lea.vmem [#allocation8], %s282
        %s284 = smul.u32 32, %s27
        %s285 = smul.u32 2, %s28
        %s286 = smul.u32 2, %s28
        %s287 = smul.u32 32, %s27
        %v288 = vld [vmem:[%s230] sm:$0xff]
        %v289 = vld [vmem:[%s230 + $0x8] sm:$0xff]
        %v290 = vld [vmem:[%s230 + $0x10] sm:$0xff]
        %v291 = vld [vmem:[%s230 + $0x18] sm:$0xff]
        %v292 = vld [vmem:[%s230 + $0x20] sm:$0xff]
        %v293 = vld [vmem:[%s230 + $0x28] sm:$0xff]
        %v294 = vld [vmem:[%s230 + $0x30] sm:$0xff]
        %v295 = vld [vmem:[%s230 + $0x38] sm:$0xff]
        %v296 = vld [vmem:[%s230 + $0x40] sm:$0xff]
        %v297 = vld [vmem:[%s230 + $0x48] sm:$0xff]
        %v298 = vld [vmem:[%s230 + $0x50] sm:$0xff]
        %v299 = vld [vmem:[%s230 + $0x58] sm:$0xff]
        %v300 = vld [vmem:[%s230 + $0x60] sm:$0xff]
        %v301 = vld [vmem:[%s230 + $0x68] sm:$0xff]
        %v302 = vld [vmem:[%s230 + $0x70] sm:$0xff]
        %v303 = vld [vmem:[%s230 + $0x78] sm:$0xff]
        %v304 = vld [vmem:[%s230 + $0x80] sm:$0xff]
        %v305 = vld [vmem:[%s230 + $0x88] sm:$0xff]
        %v306 = vld [vmem:[%s230 + $0x90] sm:$0xff]
        %v307 = vld [vmem:[%s230 + $0x98] sm:$0xff]
        %v308 = vld [vmem:[%s230 + $0xa0] sm:$0xff]
        %v309 = vld [vmem:[%s230 + $0xa8] sm:$0xff]
        %v310 = vld [vmem:[%s230 + $0xb0] sm:$0xff]
        %v311 = vld [vmem:[%s230 + $0xb8] sm:$0xff]
        %v312 = vld [vmem:[%s230 + $0xc0] sm:$0xff]
        %v313 = vld [vmem:[%s230 + $0xc8] sm:$0xff]
        %v314 = vld [vmem:[%s230 + $0xd0] sm:$0xff]
        %v315 = vld [vmem:[%s230 + $0xd8] sm:$0xff]
        %v316 = vld [vmem:[%s230 + $0xe0] sm:$0xff]
        %v317 = vld [vmem:[%s230 + $0xe8] sm:$0xff]
        %v318 = vld [vmem:[%s230 + $0xf0] sm:$0xff]
        %v319 = vld [vmem:[%s230 + $0xf8] sm:$0xff]
        %v320 = vld [vmem:[%s230 + $0x100] sm:$0xff]
        %v321 = vld [vmem:[%s230 + $0x108] sm:$0xff]
        %v322 = vld [vmem:[%s230 + $0x110] sm:$0xff]
        %v323 = vld [vmem:[%s230 + $0x118] sm:$0xff]
        %v324 = vld [vmem:[%s230 + $0x120] sm:$0xff]
        %v325 = vld [vmem:[%s230 + $0x128] sm:$0xff]
        %v326 = vld [vmem:[%s230 + $0x130] sm:$0xff]
        %v327 = vld [vmem:[%s230 + $0x138] sm:$0xff]
        %v328 = vld [vmem:[%s230 + $0x140] sm:$0xff]
        %v329 = vld [vmem:[%s230 + $0x148] sm:$0xff]
        %v330 = vld [vmem:[%s230 + $0x150] sm:$0xff]
        %v331 = vld [vmem:[%s230 + $0x158] sm:$0xff]
        %v332 = vld [vmem:[%s230 + $0x160] sm:$0xff]
        %v333 = vld [vmem:[%s230 + $0x168] sm:$0xff]
        %v334 = vld [vmem:[%s230 + $0x170] sm:$0xff]
        %v335 = vld [vmem:[%s230 + $0x178] sm:$0xff]
        %v336 = vld [vmem:[%s230 + $0x180] sm:$0xff]
        %v337 = vld [vmem:[%s230 + $0x188] sm:$0xff]
        %v338 = vld [vmem:[%s230 + $0x190] sm:$0xff]
        %v339 = vld [vmem:[%s230 + $0x198] sm:$0xff]
        %v340 = vld [vmem:[%s230 + $0x1a0] sm:$0xff]
        %v341 = vld [vmem:[%s230 + $0x1a8] sm:$0xff]
        %v342 = vld [vmem:[%s230 + $0x1b0] sm:$0xff]
        %v343 = vld [vmem:[%s230 + $0x1b8] sm:$0xff]
        %v344 = vld [vmem:[%s230 + $0x1c0] sm:$0xff]
        %v345 = vld [vmem:[%s230 + $0x1c8] sm:$0xff]
        %v346 = vld [vmem:[%s230 + $0x1d0] sm:$0xff]
        %v347 = vld [vmem:[%s230 + $0x1d8] sm:$0xff]
        %v348 = vld [vmem:[%s230 + $0x1e0] sm:$0xff]
        %v349 = vld [vmem:[%s230 + $0x1e8] sm:$0xff]
        %v350 = vld [vmem:[%s230 + $0x1f0] sm:$0xff]
        %v351 = vld [vmem:[%s230 + $0x1f8] sm:$0xff]
        %v352 = vld [vmem:[%s240] sm:$0xff]
        %v353 = vld [vmem:[%s240 + $0x8] sm:$0xff]
        %v354 = vld [vmem:[%s240 + $0x10] sm:$0xff]
        %v355 = vld [vmem:[%s240 + $0x18] sm:$0xff]
        %v356 = vld [vmem:[%s240 + $0x20] sm:$0xff]
        %v357 = vld [vmem:[%s240 + $0x28] sm:$0xff]
        %v358 = vld [vmem:[%s240 + $0x30] sm:$0xff]
        %v359 = vld [vmem:[%s240 + $0x38] sm:$0xff]
        %v360 = vld [vmem:[%s240 + $0x40] sm:$0xff]
        %v361 = vld [vmem:[%s240 + $0x48] sm:$0xff]
        %v362 = vld [vmem:[%s240 + $0x50] sm:$0xff]
        %v363 = vld [vmem:[%s240 + $0x58] sm:$0xff]
        %v364 = vld [vmem:[%s240 + $0x60] sm:$0xff]
        %v365 = vld [vmem:[%s240 + $0x68] sm:$0xff]
        %v366 = vld [vmem:[%s240 + $0x70] sm:$0xff]
        %v367 = vld [vmem:[%s240 + $0x78] sm:$0xff]
        %v368 = vld [vmem:[%s240 + $0x80] sm:$0xff]
        %v369 = vld [vmem:[%s240 + $0x88] sm:$0xff]
        %v370 = vld [vmem:[%s240 + $0x90] sm:$0xff]
        %v371 = vld [vmem:[%s240 + $0x98] sm:$0xff]
        %v372 = vld [vmem:[%s240 + $0xa0] sm:$0xff]
        %v373 = vld [vmem:[%s240 + $0xa8] sm:$0xff]
        %v374 = vld [vmem:[%s240 + $0xb0] sm:$0xff]
        %v375 = vld [vmem:[%s240 + $0xb8] sm:$0xff]
        %v376 = vld [vmem:[%s240 + $0xc0] sm:$0xff]
        %v377 = vld [vmem:[%s240 + $0xc8] sm:$0xff]
        %v378 = vld [vmem:[%s240 + $0xd0] sm:$0xff]
        %v379 = vld [vmem:[%s240 + $0xd8] sm:$0xff]
        %v380 = vld [vmem:[%s240 + $0xe0] sm:$0xff]
        %v381 = vld [vmem:[%s240 + $0xe8] sm:$0xff]
        %v382 = vld [vmem:[%s240 + $0xf0] sm:$0xff]
        %v383 = vld [vmem:[%s240 + $0xf8] sm:$0xff]
        %v384 = vld [vmem:[%s240 + $0x100] sm:$0xff]
        %v385 = vld [vmem:[%s240 + $0x108] sm:$0xff]
        %v386 = vld [vmem:[%s240 + $0x110] sm:$0xff]
        %v387 = vld [vmem:[%s240 + $0x118] sm:$0xff]
        %v388 = vld [vmem:[%s240 + $0x120] sm:$0xff]
        %v389 = vld [vmem:[%s240 + $0x128] sm:$0xff]
        %v390 = vld [vmem:[%s240 + $0x130] sm:$0xff]
        %v391 = vld [vmem:[%s240 + $0x138] sm:$0xff]
        %v392 = vld [vmem:[%s240 + $0x140] sm:$0xff]
        %v393 = vld [vmem:[%s240 + $0x148] sm:$0xff]
        %v394 = vld [vmem:[%s240 + $0x150] sm:$0xff]
        %v395 = vld [vmem:[%s240 + $0x158] sm:$0xff]
        %v396 = vld [vmem:[%s240 + $0x160] sm:$0xff]
        %v397 = vld [vmem:[%s240 + $0x168] sm:$0xff]
        %v398 = vld [vmem:[%s240 + $0x170] sm:$0xff]
        %v399 = vld [vmem:[%s240 + $0x178] sm:$0xff]
        %v400 = vld [vmem:[%s240 + $0x180] sm:$0xff]
        %v401 = vld [vmem:[%s240 + $0x188] sm:$0xff]
        %v402 = vld [vmem:[%s240 + $0x190] sm:$0xff]
        %v403 = vld [vmem:[%s240 + $0x198] sm:$0xff]
        %v404 = vld [vmem:[%s240 + $0x1a0] sm:$0xff]
        %v405 = vld [vmem:[%s240 + $0x1a8] sm:$0xff]
        %v406 = vld [vmem:[%s240 + $0x1b0] sm:$0xff]
        %v407 = vld [vmem:[%s240 + $0x1b8] sm:$0xff]
        %v408 = vld [vmem:[%s240 + $0x1c0] sm:$0xff]
        %v409 = vld [vmem:[%s240 + $0x1c8] sm:$0xff]
        %v410 = vld [vmem:[%s240 + $0x1d0] sm:$0xff]
        %v411 = vld [vmem:[%s240 + $0x1d8] sm:$0xff]
        %v412 = vld [vmem:[%s240 + $0x1e0] sm:$0xff]
        %v413 = vld [vmem:[%s240 + $0x1e8] sm:$0xff]
        %v414 = vld [vmem:[%s240 + $0x1f0] sm:$0xff]
        %v415 = vld [vmem:[%s240 + $0x1f8] sm:$0xff]
        %v416 = vld [vmem:[%s250] sm:$0x3]
        %v418 = vperm.slane %v416, 0
        %v419 = vperm.slane %v416, 1
        %422 = vmatpush.msra.mxu0 %v382
        %423 = vmatpush.msra.mxu0 %v380
        %424 = vmatpush.msra.mxu0 %v378
        %425 = vmatpush.msra.mxu0 %v376
        %426 = vmatpush.msra.mxu0 %v374
        %427 = vmatpush.msra.mxu0 %v372
        %428 = vmatpush.msra.mxu0 %v370
        %429 = vmatpush.msra.mxu0 %v368
        %430 = vmatpush.msra.mxu0 %v366
        %431 = vmatpush.msra.mxu0 %v364
        %432 = vmatpush.msra.mxu0 %v362
        %433 = vmatpush.msra.mxu0 %v360
        %434 = vmatpush.msra.mxu0 %v358
        %435 = vmatpush.msra.mxu0 %v356
        %436 = vmatpush.msra.mxu0 %v354
        %437 = vmatpush.msra.mxu0 %v352
        %438 = vmatmul.f32.gmra.mxu0 %v288
        %v439 = vpop.f32.mrf.mxu0
        %v440 = vadd.f32 %v418, %v439
        %441 = vmatmul.f32.gmra.mxu0 %v290
        %v442 = vpop.f32.mrf.mxu0
        %v443 = vadd.f32 %v418, %v442
        %444 = vmatmul.f32.gmra.mxu0 %v292
        %v445 = vpop.f32.mrf.mxu0
        %v446 = vadd.f32 %v418, %v445
        %447 = vmatmul.f32.gmra.mxu0 %v294
        %v448 = vpop.f32.mrf.mxu0
        %v449 = vadd.f32 %v418, %v448
        %450 = vmatmul.f32.gmra.mxu0 %v296
        %v451 = vpop.f32.mrf.mxu0
        %v452 = vadd.f32 %v418, %v451
        %453 = vmatmul.f32.gmra.mxu0 %v298
        %v454 = vpop.f32.mrf.mxu0
        %v455 = vadd.f32 %v418, %v454
        %456 = vmatmul.f32.gmra.mxu0 %v300
        %v457 = vpop.f32.mrf.mxu0
        %v458 = vadd.f32 %v418, %v457
        %459 = vmatmul.f32.gmra.mxu0 %v302
        %v460 = vpop.f32.mrf.mxu0
        %v461 = vadd.f32 %v418, %v460
        %462 = vmatmul.f32.gmra.mxu0 %v304
        %v463 = vpop.f32.mrf.mxu0
        %v464 = vadd.f32 %v418, %v463
        %465 = vmatmul.f32.gmra.mxu0 %v306
        %v466 = vpop.f32.mrf.mxu0
        %v467 = vadd.f32 %v418, %v466
        %468 = vmatmul.f32.gmra.mxu0 %v308
        %v469 = vpop.f32.mrf.mxu0
        %v470 = vadd.f32 %v418, %v469
        %471 = vmatmul.f32.gmra.mxu0 %v310
        %v472 = vpop.f32.mrf.mxu0
        %v473 = vadd.f32 %v418, %v472
        %474 = vmatmul.f32.gmra.mxu0 %v312
        %v475 = vpop.f32.mrf.mxu0
        %v476 = vadd.f32 %v418, %v475
        %477 = vmatmul.f32.gmra.mxu0 %v314
        %v478 = vpop.f32.mrf.mxu0
        %v479 = vadd.f32 %v418, %v478
        %480 = vmatmul.f32.gmra.mxu0 %v316
        %v481 = vpop.f32.mrf.mxu0
        %v482 = vadd.f32 %v418, %v481
        %483 = vmatmul.f32.gmra.mxu0 %v318
        %v484 = vpop.f32.mrf.mxu0
        %v485 = vadd.f32 %v418, %v484
        %486 = vmatmul.f32.gmra.mxu0 %v320
        %v487 = vpop.f32.mrf.mxu0
        %v488 = vadd.f32 %v418, %v487
        %489 = vmatmul.f32.gmra.mxu0 %v322
        %v490 = vpop.f32.mrf.mxu0
        %v491 = vadd.f32 %v418, %v490
        %492 = vmatmul.f32.gmra.mxu0 %v324
        %v493 = vpop.f32.mrf.mxu0
        %v494 = vadd.f32 %v418, %v493
        %495 = vmatmul.f32.gmra.mxu0 %v326
        %v496 = vpop.f32.mrf.mxu0
        %v497 = vadd.f32 %v418, %v496
        %498 = vmatmul.f32.gmra.mxu0 %v328
        %v499 = vpop.f32.mrf.mxu0
        %v500 = vadd.f32 %v418, %v499
        %501 = vmatmul.f32.gmra.mxu0 %v330
        %v502 = vpop.f32.mrf.mxu0
        %v503 = vadd.f32 %v418, %v502
        %504 = vmatmul.f32.gmra.mxu0 %v332
        %v505 = vpop.f32.mrf.mxu0
        %v506 = vadd.f32 %v418, %v505
        %507 = vmatmul.f32.gmra.mxu0 %v334
        %v508 = vpop.f32.mrf.mxu0
        %v509 = vadd.f32 %v418, %v508
        %510 = vmatmul.f32.gmra.mxu0 %v336
        %v511 = vpop.f32.mrf.mxu0
        %v512 = vadd.f32 %v418, %v511
        %513 = vmatmul.f32.gmra.mxu0 %v338
        %v514 = vpop.f32.mrf.mxu0
        %v515 = vadd.f32 %v418, %v514
        %516 = vmatmul.f32.gmra.mxu0 %v340
        %v517 = vpop.f32.mrf.mxu0
        %v518 = vadd.f32 %v418, %v517
        %519 = vmatmul.f32.gmra.mxu0 %v342
        %v520 = vpop.f32.mrf.mxu0
        %v521 = vadd.f32 %v418, %v520
        %522 = vmatmul.f32.gmra.mxu0 %v344
        %v523 = vpop.f32.mrf.mxu0
        %v524 = vadd.f32 %v418, %v523
        %525 = vmatmul.f32.gmra.mxu0 %v346
        %v526 = vpop.f32.mrf.mxu0
        %v527 = vadd.f32 %v418, %v526
        %528 = vmatmul.f32.gmra.mxu0 %v348
        %v529 = vpop.f32.mrf.mxu0
        %v530 = vadd.f32 %v418, %v529
        %531 = vmatmul.f32.gmra.mxu0 %v350
        %v532 = vpop.f32.mrf.mxu0
        %v533 = vadd.f32 %v418, %v532
        %534 = vdwg.mxu0
        %535 = vmatpush.msra.mxu0 %v414
        %536 = vmatpush.msra.mxu0 %v412
        %537 = vmatpush.msra.mxu0 %v410
        %538 = vmatpush.msra.mxu0 %v408
        %539 = vmatpush.msra.mxu0 %v406
        %540 = vmatpush.msra.mxu0 %v404
        %541 = vmatpush.msra.mxu0 %v402
        %542 = vmatpush.msra.mxu0 %v400
        %543 = vmatpush.msra.mxu0 %v398
        %544 = vmatpush.msra.mxu0 %v396
        %545 = vmatpush.msra.mxu0 %v394
        %546 = vmatpush.msra.mxu0 %v392
        %547 = vmatpush.msra.mxu0 %v390
        %548 = vmatpush.msra.mxu0 %v388
        %549 = vmatpush.msra.mxu0 %v386
        %550 = vmatpush.msra.mxu0 %v384
        %551 = vmatmul.f32.gmra.mxu0 %v289
        %v552 = vpop.f32.mrf.mxu0
        %v553 = vadd.f32 %v440, %v552
        %554 = vmatmul.f32.gmra.mxu0 %v291
        %v555 = vpop.f32.mrf.mxu0
        %v556 = vadd.f32 %v443, %v555
        %557 = vmatmul.f32.gmra.mxu0 %v293
        %v558 = vpop.f32.mrf.mxu0
        %v559 = vadd.f32 %v446, %v558
        %560 = vmatmul.f32.gmra.mxu0 %v295
        %v561 = vpop.f32.mrf.mxu0
        %v562 = vadd.f32 %v449, %v561
        %563 = vmatmul.f32.gmra.mxu0 %v297
        %v564 = vpop.f32.mrf.mxu0
        %v565 = vadd.f32 %v452, %v564
        %566 = vmatmul.f32.gmra.mxu0 %v299
        %v567 = vpop.f32.mrf.mxu0
        %v568 = vadd.f32 %v455, %v567
        %569 = vmatmul.f32.gmra.mxu0 %v301
        %v570 = vpop.f32.mrf.mxu0
        %v571 = vadd.f32 %v458, %v570
        %572 = vmatmul.f32.gmra.mxu0 %v303
        %v573 = vpop.f32.mrf.mxu0
        %v574 = vadd.f32 %v461, %v573
        %575 = vmatmul.f32.gmra.mxu0 %v305
        %v576 = vpop.f32.mrf.mxu0
        %v577 = vadd.f32 %v464, %v576
        %578 = vmatmul.f32.gmra.mxu0 %v307
        %v579 = vpop.f32.mrf.mxu0
        %v580 = vadd.f32 %v467, %v579
        %581 = vmatmul.f32.gmra.mxu0 %v309
        %v582 = vpop.f32.mrf.mxu0
        %v583 = vadd.f32 %v470, %v582
        %584 = vmatmul.f32.gmra.mxu0 %v311
        %v585 = vpop.f32.mrf.mxu0
        %v586 = vadd.f32 %v473, %v585
        %587 = vmatmul.f32.gmra.mxu0 %v313
        %v588 = vpop.f32.mrf.mxu0
        %v589 = vadd.f32 %v476, %v588
        %590 = vmatmul.f32.gmra.mxu0 %v315
        %v591 = vpop.f32.mrf.mxu0
        %v592 = vadd.f32 %v479, %v591
        %593 = vmatmul.f32.gmra.mxu0 %v317
        %v594 = vpop.f32.mrf.mxu0
        %v595 = vadd.f32 %v482, %v594
        %596 = vmatmul.f32.gmra.mxu0 %v319
        %v597 = vpop.f32.mrf.mxu0
        %v598 = vadd.f32 %v485, %v597
        %599 = vmatmul.f32.gmra.mxu0 %v321
        %v600 = vpop.f32.mrf.mxu0
        %v601 = vadd.f32 %v488, %v600
        %602 = vmatmul.f32.gmra.mxu0 %v323
        %v603 = vpop.f32.mrf.mxu0
        %v604 = vadd.f32 %v491, %v603
        %605 = vmatmul.f32.gmra.mxu0 %v325
        %v606 = vpop.f32.mrf.mxu0
        %v607 = vadd.f32 %v494, %v606
        %608 = vmatmul.f32.gmra.mxu0 %v327
        %v609 = vpop.f32.mrf.mxu0
        %v610 = vadd.f32 %v497, %v609
        %611 = vmatmul.f32.gmra.mxu0 %v329
        %v612 = vpop.f32.mrf.mxu0
        %v613 = vadd.f32 %v500, %v612
        %614 = vmatmul.f32.gmra.mxu0 %v331
        %v615 = vpop.f32.mrf.mxu0
        %v616 = vadd.f32 %v503, %v615
        %617 = vmatmul.f32.gmra.mxu0 %v333
        %v618 = vpop.f32.mrf.mxu0
        %v619 = vadd.f32 %v506, %v618
        %620 = vmatmul.f32.gmra.mxu0 %v335
        %v621 = vpop.f32.mrf.mxu0
        %v622 = vadd.f32 %v509, %v621
        %623 = vmatmul.f32.gmra.mxu0 %v337
        %v624 = vpop.f32.mrf.mxu0
        %v625 = vadd.f32 %v512, %v624
        %626 = vmatmul.f32.gmra.mxu0 %v339
        %v627 = vpop.f32.mrf.mxu0
        %v628 = vadd.f32 %v515, %v627
        %629 = vmatmul.f32.gmra.mxu0 %v341
        %v630 = vpop.f32.mrf.mxu0
        %v631 = vadd.f32 %v518, %v630
        %632 = vmatmul.f32.gmra.mxu0 %v343
        %v633 = vpop.f32.mrf.mxu0
        %v634 = vadd.f32 %v521, %v633
        %635 = vmatmul.f32.gmra.mxu0 %v345
        %v636 = vpop.f32.mrf.mxu0
        %v637 = vadd.f32 %v524, %v636
        %638 = vmatmul.f32.gmra.mxu0 %v347
        %v639 = vpop.f32.mrf.mxu0
        %v640 = vadd.f32 %v527, %v639
        %641 = vmatmul.f32.gmra.mxu0 %v349
        %v642 = vpop.f32.mrf.mxu0
        %v643 = vadd.f32 %v530, %v642
        %644 = vmatmul.f32.gmra.mxu0 %v351
        %v645 = vpop.f32.mrf.mxu0
        %v646 = vadd.f32 %v533, %v645
        %647 = vdwg.mxu0
        %648 = vmatpush.msra.mxu0 %v383
        %649 = vmatpush.msra.mxu0 %v381
        %650 = vmatpush.msra.mxu0 %v379
        %651 = vmatpush.msra.mxu0 %v377
        %652 = vmatpush.msra.mxu0 %v375
        %653 = vmatpush.msra.mxu0 %v373
        %654 = vmatpush.msra.mxu0 %v371
        %655 = vmatpush.msra.mxu0 %v369
        %656 = vmatpush.msra.mxu0 %v367
        %657 = vmatpush.msra.mxu0 %v365
        %658 = vmatpush.msra.mxu0 %v363
        %659 = vmatpush.msra.mxu0 %v361
        %660 = vmatpush.msra.mxu0 %v359
        %661 = vmatpush.msra.mxu0 %v357
        %662 = vmatpush.msra.mxu0 %v355
        %663 = vmatpush.msra.mxu0 %v353
        %664 = vmatmul.f32.gmra.mxu0 %v288
        %v665 = vpop.f32.mrf.mxu0
        %v666 = vadd.f32 %v419, %v665
        %667 = vmatmul.f32.gmra.mxu0 %v290
        %v668 = vpop.f32.mrf.mxu0
        %v669 = vadd.f32 %v419, %v668
        %670 = vmatmul.f32.gmra.mxu0 %v292
        %v671 = vpop.f32.mrf.mxu0
        %v672 = vadd.f32 %v419, %v671
        %673 = vmatmul.f32.gmra.mxu0 %v294
        %v674 = vpop.f32.mrf.mxu0
        %v675 = vadd.f32 %v419, %v674
        %676 = vmatmul.f32.gmra.mxu0 %v296
        %v677 = vpop.f32.mrf.mxu0
        %v678 = vadd.f32 %v419, %v677
        %679 = vmatmul.f32.gmra.mxu0 %v298
        %v680 = vpop.f32.mrf.mxu0
        %v681 = vadd.f32 %v419, %v680
        %682 = vmatmul.f32.gmra.mxu0 %v300
        %v683 = vpop.f32.mrf.mxu0
        %v684 = vadd.f32 %v419, %v683
        %685 = vmatmul.f32.gmra.mxu0 %v302
        %v686 = vpop.f32.mrf.mxu0
        %v687 = vadd.f32 %v419, %v686
        %688 = vmatmul.f32.gmra.mxu0 %v304
        %v689 = vpop.f32.mrf.mxu0
        %v690 = vadd.f32 %v419, %v689
        %691 = vmatmul.f32.gmra.mxu0 %v306
        %v692 = vpop.f32.mrf.mxu0
        %v693 = vadd.f32 %v419, %v692
        %694 = vmatmul.f32.gmra.mxu0 %v308
        %v695 = vpop.f32.mrf.mxu0
        %v696 = vadd.f32 %v419, %v695
        %697 = vmatmul.f32.gmra.mxu0 %v310
        %v698 = vpop.f32.mrf.mxu0
        %v699 = vadd.f32 %v419, %v698
        %700 = vmatmul.f32.gmra.mxu0 %v312
        %v701 = vpop.f32.mrf.mxu0
        %v702 = vadd.f32 %v419, %v701
        %703 = vmatmul.f32.gmra.mxu0 %v314
        %v704 = vpop.f32.mrf.mxu0
        %v705 = vadd.f32 %v419, %v704
        %706 = vmatmul.f32.gmra.mxu0 %v316
        %v707 = vpop.f32.mrf.mxu0
        %v708 = vadd.f32 %v419, %v707
        %709 = vmatmul.f32.gmra.mxu0 %v318
        %v710 = vpop.f32.mrf.mxu0
        %v711 = vadd.f32 %v419, %v710
        %712 = vmatmul.f32.gmra.mxu0 %v320
        %v713 = vpop.f32.mrf.mxu0
        %v714 = vadd.f32 %v419, %v713
        %715 = vmatmul.f32.gmra.mxu0 %v322
        %v716 = vpop.f32.mrf.mxu0
        %v717 = vadd.f32 %v419, %v716
        %718 = vmatmul.f32.gmra.mxu0 %v324
        %v719 = vpop.f32.mrf.mxu0
        %v720 = vadd.f32 %v419, %v719
        %721 = vmatmul.f32.gmra.mxu0 %v326
        %v722 = vpop.f32.mrf.mxu0
        %v723 = vadd.f32 %v419, %v722
        %724 = vmatmul.f32.gmra.mxu0 %v328
        %v725 = vpop.f32.mrf.mxu0
        %v726 = vadd.f32 %v419, %v725
        %727 = vmatmul.f32.gmra.mxu0 %v330
        %v728 = vpop.f32.mrf.mxu0
        %v729 = vadd.f32 %v419, %v728
        %730 = vmatmul.f32.gmra.mxu0 %v332
        %v731 = vpop.f32.mrf.mxu0
        %v732 = vadd.f32 %v419, %v731
        %733 = vmatmul.f32.gmra.mxu0 %v334
        %v734 = vpop.f32.mrf.mxu0
        %v735 = vadd.f32 %v419, %v734
        %736 = vmatmul.f32.gmra.mxu0 %v336
        %v737 = vpop.f32.mrf.mxu0
        %v738 = vadd.f32 %v419, %v737
        %739 = vmatmul.f32.gmra.mxu0 %v338
        %v740 = vpop.f32.mrf.mxu0
        %v741 = vadd.f32 %v419, %v740
        %742 = vmatmul.f32.gmra.mxu0 %v340
        %v743 = vpop.f32.mrf.mxu0
        %v744 = vadd.f32 %v419, %v743
        %745 = vmatmul.f32.gmra.mxu0 %v342
        %v746 = vpop.f32.mrf.mxu0
        %v747 = vadd.f32 %v419, %v746
        %748 = vmatmul.f32.gmra.mxu0 %v344
        %v749 = vpop.f32.mrf.mxu0
        %v750 = vadd.f32 %v419, %v749
        %751 = vmatmul.f32.gmra.mxu0 %v346
        %v752 = vpop.f32.mrf.mxu0
        %v753 = vadd.f32 %v419, %v752
        %754 = vmatmul.f32.gmra.mxu0 %v348
        %v755 = vpop.f32.mrf.mxu0
        %v756 = vadd.f32 %v419, %v755
        %757 = vmatmul.f32.gmra.mxu0 %v350
        %v758 = vpop.f32.mrf.mxu0
        %v759 = vadd.f32 %v419, %v758
        %760 = vdwg.mxu0
        %761 = vmatpush.msra.mxu0 %v415
        %762 = vmatpush.msra.mxu0 %v413
        %763 = vmatpush.msra.mxu0 %v411
        %764 = vmatpush.msra.mxu0 %v409
        %765 = vmatpush.msra.mxu0 %v407
        %766 = vmatpush.msra.mxu0 %v405
        %767 = vmatpush.msra.mxu0 %v403
        %768 = vmatpush.msra.mxu0 %v401
        %769 = vmatpush.msra.mxu0 %v399
        %770 = vmatpush.msra.mxu0 %v397
        %771 = vmatpush.msra.mxu0 %v395
        %772 = vmatpush.msra.mxu0 %v393
        %773 = vmatpush.msra.mxu0 %v391
        %774 = vmatpush.msra.mxu0 %v389
        %775 = vmatpush.msra.mxu0 %v387
        %776 = vmatpush.msra.mxu0 %v385
        %777 = vmatmul.f32.gmra.mxu0 %v289
        %v778 = vpop.f32.mrf.mxu0
        %v779 = vadd.f32 %v666, %v778
        %780 = vmatmul.f32.gmra.mxu0 %v291
        %v781 = vpop.f32.mrf.mxu0
        %v782 = vadd.f32 %v669, %v781
        %783 = vmatmul.f32.gmra.mxu0 %v293
        %v784 = vpop.f32.mrf.mxu0
        %v785 = vadd.f32 %v672, %v784
        %786 = vmatmul.f32.gmra.mxu0 %v295
        %v787 = vpop.f32.mrf.mxu0
        %v788 = vadd.f32 %v675, %v787
        %789 = vmatmul.f32.gmra.mxu0 %v297
        %v790 = vpop.f32.mrf.mxu0
        %v791 = vadd.f32 %v678, %v790
        %792 = vmatmul.f32.gmra.mxu0 %v299
        %v793 = vpop.f32.mrf.mxu0
        %v794 = vadd.f32 %v681, %v793
        %795 = vmatmul.f32.gmra.mxu0 %v301
        %v796 = vpop.f32.mrf.mxu0
        %v797 = vadd.f32 %v684, %v796
        %798 = vmatmul.f32.gmra.mxu0 %v303
        %v799 = vpop.f32.mrf.mxu0
        %v800 = vadd.f32 %v687, %v799
        %801 = vmatmul.f32.gmra.mxu0 %v305
        %v802 = vpop.f32.mrf.mxu0
        %v803 = vadd.f32 %v690, %v802
        %804 = vmatmul.f32.gmra.mxu0 %v307
        %v805 = vpop.f32.mrf.mxu0
        %v806 = vadd.f32 %v693, %v805
        %807 = vmatmul.f32.gmra.mxu0 %v309
        %v808 = vpop.f32.mrf.mxu0
        %v809 = vadd.f32 %v696, %v808
        %810 = vmatmul.f32.gmra.mxu0 %v311
        %v811 = vpop.f32.mrf.mxu0
        %v812 = vadd.f32 %v699, %v811
        %813 = vmatmul.f32.gmra.mxu0 %v313
        %v814 = vpop.f32.mrf.mxu0
        %v815 = vadd.f32 %v702, %v814
        %816 = vmatmul.f32.gmra.mxu0 %v315
        %v817 = vpop.f32.mrf.mxu0
        %v818 = vadd.f32 %v705, %v817
        %819 = vmatmul.f32.gmra.mxu0 %v317
        %v820 = vpop.f32.mrf.mxu0
        %v821 = vadd.f32 %v708, %v820
        %822 = vmatmul.f32.gmra.mxu0 %v319
        %v823 = vpop.f32.mrf.mxu0
        %v824 = vadd.f32 %v711, %v823
        %825 = vmatmul.f32.gmra.mxu0 %v321
        %v826 = vpop.f32.mrf.mxu0
        %v827 = vadd.f32 %v714, %v826
        %828 = vmatmul.f32.gmra.mxu0 %v323
        %v829 = vpop.f32.mrf.mxu0
        %v830 = vadd.f32 %v717, %v829
        %831 = vmatmul.f32.gmra.mxu0 %v325
        %v832 = vpop.f32.mrf.mxu0
        %v833 = vadd.f32 %v720, %v832
        %834 = vmatmul.f32.gmra.mxu0 %v327
        %v835 = vpop.f32.mrf.mxu0
        %v836 = vadd.f32 %v723, %v835
        %837 = vmatmul.f32.gmra.mxu0 %v329
        %v838 = vpop.f32.mrf.mxu0
        %v839 = vadd.f32 %v726, %v838
        %840 = vmatmul.f32.gmra.mxu0 %v331
        %v841 = vpop.f32.mrf.mxu0
        %v842 = vadd.f32 %v729, %v841
        %843 = vmatmul.f32.gmra.mxu0 %v333
        %v844 = vpop.f32.mrf.mxu0
        %v845 = vadd.f32 %v732, %v844
        %846 = vmatmul.f32.gmra.mxu0 %v335
        %v847 = vpop.f32.mrf.mxu0
        %v848 = vadd.f32 %v735, %v847
        %849 = vmatmul.f32.gmra.mxu0 %v337
        %v850 = vpop.f32.mrf.mxu0
        %v851 = vadd.f32 %v738, %v850
        %852 = vmatmul.f32.gmra.mxu0 %v339
        %v853 = vpop.f32.mrf.mxu0
        %v854 = vadd.f32 %v741, %v853
        %855 = vmatmul.f32.gmra.mxu0 %v341
        %v856 = vpop.f32.mrf.mxu0
        %v857 = vadd.f32 %v744, %v856
        %858 = vmatmul.f32.gmra.mxu0 %v343
        %v859 = vpop.f32.mrf.mxu0
        %v860 = vadd.f32 %v747, %v859
        %861 = vmatmul.f32.gmra.mxu0 %v345
        %v862 = vpop.f32.mrf.mxu0
        %v863 = vadd.f32 %v750, %v862
        %864 = vmatmul.f32.gmra.mxu0 %v347
        %v865 = vpop.f32.mrf.mxu0
        %v866 = vadd.f32 %v753, %v865
        %867 = vmatmul.f32.gmra.mxu0 %v349
        %v868 = vpop.f32.mrf.mxu0
        %v869 = vadd.f32 %v756, %v868
        %870 = vmatmul.f32.gmra.mxu0 %v351
        %v871 = vpop.f32.mrf.mxu0
        %v872 = vadd.f32 %v759, %v871
        %873 = vdwg.mxu0
        %v874 = vxor.u32 %v553, 2147483648
        %v875 = vxor.u32 %v556, 2147483648
        %v876 = vxor.u32 %v559, 2147483648
        %v877 = vxor.u32 %v562, 2147483648
        %v878 = vxor.u32 %v565, 2147483648
        %v879 = vxor.u32 %v568, 2147483648
        %v880 = vxor.u32 %v571, 2147483648
        %v881 = vxor.u32 %v574, 2147483648
        %v882 = vxor.u32 %v577, 2147483648
        %v883 = vxor.u32 %v580, 2147483648
        %v884 = vxor.u32 %v583, 2147483648
        %v885 = vxor.u32 %v586, 2147483648
        %v886 = vxor.u32 %v589, 2147483648
        %v887 = vxor.u32 %v592, 2147483648
        %v888 = vxor.u32 %v595, 2147483648
        %v889 = vxor.u32 %v598, 2147483648
        %v890 = vxor.u32 %v601, 2147483648
        %v891 = vxor.u32 %v604, 2147483648
        %v892 = vxor.u32 %v607, 2147483648
        %v893 = vxor.u32 %v610, 2147483648
        %v894 = vxor.u32 %v613, 2147483648
        %v895 = vxor.u32 %v616, 2147483648
        %v896 = vxor.u32 %v619, 2147483648
        %v897 = vxor.u32 %v622, 2147483648
        %v898 = vxor.u32 %v625, 2147483648
        %v899 = vxor.u32 %v628, 2147483648
        %v900 = vxor.u32 %v631, 2147483648
        %v901 = vxor.u32 %v634, 2147483648
        %v902 = vxor.u32 %v637, 2147483648
        %v903 = vxor.u32 %v640, 2147483648
        %v904 = vxor.u32 %v643, 2147483648
        %v905 = vxor.u32 %v646, 2147483648
        %v906 = vmul.f32 %v874, 1.442695
        %v907 = vpow.pop %v906
        %v908 = vmul.f32 %v875, 1.442695
        %v909 = vpow.pop %v908
        %v910 = vmul.f32 %v876, 1.442695
        %v911 = vpow.pop %v910
        %v912 = vmul.f32 %v877, 1.442695
        %v913 = vpow.pop %v912
        %v914 = vmul.f32 %v878, 1.442695
        %v915 = vpow.pop %v914
        %v916 = vmul.f32 %v879, 1.442695
        %v917 = vpow.pop %v916
        %v918 = vmul.f32 %v880, 1.442695
        %v919 = vpow.pop %v918
        %v920 = vmul.f32 %v881, 1.442695
        %v921 = vpow.pop %v920
        %v922 = vmul.f32 %v882, 1.442695
        %v923 = vpow.pop %v922
        %v924 = vmul.f32 %v883, 1.442695
        %v925 = vpow.pop %v924
        %v926 = vmul.f32 %v884, 1.442695
        %v927 = vpow.pop %v926
        %v928 = vmul.f32 %v885, 1.442695
        %v929 = vpow.pop %v928
        %v930 = vmul.f32 %v886, 1.442695
        %v931 = vpow.pop %v930
        %v932 = vmul.f32 %v887, 1.442695
        %v933 = vpow.pop %v932
        %v934 = vmul.f32 %v888, 1.442695
        %v935 = vpow.pop %v934
        %v936 = vmul.f32 %v889, 1.442695
        %v937 = vpow.pop %v936
        %v938 = vmul.f32 %v890, 1.442695
        %v939 = vpow.pop %v938
        %v940 = vmul.f32 %v891, 1.442695
        %v941 = vpow.pop %v940
        %v942 = vmul.f32 %v892, 1.442695
        %v943 = vpow.pop %v942
        %v944 = vmul.f32 %v893, 1.442695
        %v945 = vpow.pop %v944
        %v946 = vmul.f32 %v894, 1.442695
        %v947 = vpow.pop %v946
        %v948 = vmul.f32 %v895, 1.442695
        %v949 = vpow.pop %v948
        %v950 = vmul.f32 %v896, 1.442695
        %v951 = vpow.pop %v950
        %v952 = vmul.f32 %v897, 1.442695
        %v953 = vpow.pop %v952
        %v954 = vmul.f32 %v898, 1.442695
        %v955 = vpow.pop %v954
        %v956 = vmul.f32 %v899, 1.442695
        %v957 = vpow.pop %v956
        %v958 = vmul.f32 %v900, 1.442695
        %v959 = vpow.pop %v958
        %v960 = vmul.f32 %v901, 1.442695
        %v961 = vpow.pop %v960
        %v962 = vmul.f32 %v902, 1.442695
        %v963 = vpow.pop %v962
        %v964 = vmul.f32 %v903, 1.442695
        %v965 = vpow.pop %v964
        %v966 = vmul.f32 %v904, 1.442695
        %v967 = vpow.pop %v966
        %v968 = vmul.f32 %v905, 1.442695
        %v969 = vpow.pop %v968
        %v970 = vadd.f32 %v907, 1.0
        %v971 = vadd.f32 %v909, 1.0
        %v972 = vadd.f32 %v911, 1.0
        %v973 = vadd.f32 %v913, 1.0
        %v974 = vadd.f32 %v915, 1.0
        %v975 = vadd.f32 %v917, 1.0
        %v976 = vadd.f32 %v919, 1.0
        %v977 = vadd.f32 %v921, 1.0
        %v978 = vadd.f32 %v923, 1.0
        %v979 = vadd.f32 %v925, 1.0
        %v980 = vadd.f32 %v927, 1.0
        %v981 = vadd.f32 %v929, 1.0
        %v982 = vadd.f32 %v931, 1.0
        %v983 = vadd.f32 %v933, 1.0
        %v984 = vadd.f32 %v935, 1.0
        %v985 = vadd.f32 %v937, 1.0
        %v986 = vadd.f32 %v939, 1.0
        %v987 = vadd.f32 %v941, 1.0
        %v988 = vadd.f32 %v943, 1.0
        %v989 = vadd.f32 %v945, 1.0
        %v990 = vadd.f32 %v947, 1.0
        %v991 = vadd.f32 %v949, 1.0
        %v992 = vadd.f32 %v951, 1.0
        %v993 = vadd.f32 %v953, 1.0
        %v994 = vadd.f32 %v955, 1.0
        %v995 = vadd.f32 %v957, 1.0
        %v996 = vadd.f32 %v959, 1.0
        %v997 = vadd.f32 %v961, 1.0
        %v998 = vadd.f32 %v963, 1.0
        %v999 = vadd.f32 %v965, 1.0
        %v1000 = vadd.f32 %v967, 1.0
        %v1001 = vadd.f32 %v969, 1.0
        %v1002 = vrcp.pop %v970
        %v1003 = vmul.f32 %v970, %v1002
        %v1004 = vsub.f32 1.0, %v1003
        %v1005 = vmul.f32 %v1002, %v1004
        %v1006 = vadd.f32 %v1002, %v1005
        %vm1007 = vweird.f32 %v970
        %vm1008 = vweird.f32 %v1002
        %vm1009 = vmor %vm1007, %vm1008
        %v1010 = vsel %vm1009, %v1002, %v1006
        %v1011 = vand.u32 2147483647, %v970
        %vm1012 = vcmp.eq.f32.partialorder %v1011, 8.507059e+37
        %v1013 = vand.u32 %v970, 2147483648
        %v1014 = vor.u32 1.1754944e-38, %v1013
        %v1015 = vsel %vm1012, %v1014, %v1010
        %v1016 = vmul.f32 1.0, %v1015
        %v1017 = vrcp.pop %v971
        %v1018 = vmul.f32 %v971, %v1017
        %v1019 = vsub.f32 1.0, %v1018
        %v1020 = vmul.f32 %v1017, %v1019
        %v1021 = vadd.f32 %v1017, %v1020
        %vm1022 = vweird.f32 %v971
        %vm1023 = vweird.f32 %v1017
        %vm1024 = vmor %vm1022, %vm1023
        %v1025 = vsel %vm1024, %v1017, %v1021
        %v1026 = vand.u32 2147483647, %v971
        %vm1027 = vcmp.eq.f32.partialorder %v1026, 8.507059e+37
        %v1028 = vand.u32 %v971, 2147483648
        %v1029 = vor.u32 1.1754944e-38, %v1028
        %v1030 = vsel %vm1027, %v1029, %v1025
        %v1031 = vmul.f32 1.0, %v1030
        %v1032 = vrcp.pop %v972
        %v1033 = vmul.f32 %v972, %v1032
        %v1034 = vsub.f32 1.0, %v1033
        %v1035 = vmul.f32 %v1032, %v1034
        %v1036 = vadd.f32 %v1032, %v1035
        %vm1037 = vweird.f32 %v972
        %vm1038 = vweird.f32 %v1032
        %vm1039 = vmor %vm1037, %vm1038
        %v1040 = vsel %vm1039, %v1032, %v1036
        %v1041 = vand.u32 2147483647, %v972
        %vm1042 = vcmp.eq.f32.partialorder %v1041, 8.507059e+37
        %v1043 = vand.u32 %v972, 2147483648
        %v1044 = vor.u32 1.1754944e-38, %v1043
        %v1045 = vsel %vm1042, %v1044, %v1040
        %v1046 = vmul.f32 1.0, %v1045
        %v1047 = vrcp.pop %v973
        %v1048 = vmul.f32 %v973, %v1047
        %v1049 = vsub.f32 1.0, %v1048
        %v1050 = vmul.f32 %v1047, %v1049
        %v1051 = vadd.f32 %v1047, %v1050
        %vm1052 = vweird.f32 %v973
        %vm1053 = vweird.f32 %v1047
        %vm1054 = vmor %vm1052, %vm1053
        %v1055 = vsel %vm1054, %v1047, %v1051
        %v1056 = vand.u32 2147483647, %v973
        %vm1057 = vcmp.eq.f32.partialorder %v1056, 8.507059e+37
        %v1058 = vand.u32 %v973, 2147483648
        %v1059 = vor.u32 1.1754944e-38, %v1058
        %v1060 = vsel %vm1057, %v1059, %v1055
        %v1061 = vmul.f32 1.0, %v1060
        %v1062 = vrcp.pop %v974
        %v1063 = vmul.f32 %v974, %v1062
        %v1064 = vsub.f32 1.0, %v1063
        %v1065 = vmul.f32 %v1062, %v1064
        %v1066 = vadd.f32 %v1062, %v1065
        %vm1067 = vweird.f32 %v974
        %vm1068 = vweird.f32 %v1062
        %vm1069 = vmor %vm1067, %vm1068
        %v1070 = vsel %vm1069, %v1062, %v1066
        %v1071 = vand.u32 2147483647, %v974
        %vm1072 = vcmp.eq.f32.partialorder %v1071, 8.507059e+37
        %v1073 = vand.u32 %v974, 2147483648
        %v1074 = vor.u32 1.1754944e-38, %v1073
        %v1075 = vsel %vm1072, %v1074, %v1070
        %v1076 = vmul.f32 1.0, %v1075
        %v1077 = vrcp.pop %v975
        %v1078 = vmul.f32 %v975, %v1077
        %v1079 = vsub.f32 1.0, %v1078
        %v1080 = vmul.f32 %v1077, %v1079
        %v1081 = vadd.f32 %v1077, %v1080
        %vm1082 = vweird.f32 %v975
        %vm1083 = vweird.f32 %v1077
        %vm1084 = vmor %vm1082, %vm1083
        %v1085 = vsel %vm1084, %v1077, %v1081
        %v1086 = vand.u32 2147483647, %v975
        %vm1087 = vcmp.eq.f32.partialorder %v1086, 8.507059e+37
        %v1088 = vand.u32 %v975, 2147483648
        %v1089 = vor.u32 1.1754944e-38, %v1088
        %v1090 = vsel %vm1087, %v1089, %v1085
        %v1091 = vmul.f32 1.0, %v1090
        %v1092 = vrcp.pop %v976
        %v1093 = vmul.f32 %v976, %v1092
        %v1094 = vsub.f32 1.0, %v1093
        %v1095 = vmul.f32 %v1092, %v1094
        %v1096 = vadd.f32 %v1092, %v1095
        %vm1097 = vweird.f32 %v976
        %vm1098 = vweird.f32 %v1092
        %vm1099 = vmor %vm1097, %vm1098
        %v1100 = vsel %vm1099, %v1092, %v1096
        %v1101 = vand.u32 2147483647, %v976
        %vm1102 = vcmp.eq.f32.partialorder %v1101, 8.507059e+37
        %v1103 = vand.u32 %v976, 2147483648
        %v1104 = vor.u32 1.1754944e-38, %v1103
        %v1105 = vsel %vm1102, %v1104, %v1100
        %v1106 = vmul.f32 1.0, %v1105
        %v1107 = vrcp.pop %v977
        %v1108 = vmul.f32 %v977, %v1107
        %v1109 = vsub.f32 1.0, %v1108
        %v1110 = vmul.f32 %v1107, %v1109
        %v1111 = vadd.f32 %v1107, %v1110
        %vm1112 = vweird.f32 %v977
        %vm1113 = vweird.f32 %v1107
        %vm1114 = vmor %vm1112, %vm1113
        %v1115 = vsel %vm1114, %v1107, %v1111
        %v1116 = vand.u32 2147483647, %v977
        %vm1117 = vcmp.eq.f32.partialorder %v1116, 8.507059e+37
        %v1118 = vand.u32 %v977, 2147483648
        %v1119 = vor.u32 1.1754944e-38, %v1118
        %v1120 = vsel %vm1117, %v1119, %v1115
        %v1121 = vmul.f32 1.0, %v1120
        %v1122 = vrcp.pop %v978
        %v1123 = vmul.f32 %v978, %v1122
        %v1124 = vsub.f32 1.0, %v1123
        %v1125 = vmul.f32 %v1122, %v1124
        %v1126 = vadd.f32 %v1122, %v1125
        %vm1127 = vweird.f32 %v978
        %vm1128 = vweird.f32 %v1122
        %vm1129 = vmor %vm1127, %vm1128
        %v1130 = vsel %vm1129, %v1122, %v1126
        %v1131 = vand.u32 2147483647, %v978
        %vm1132 = vcmp.eq.f32.partialorder %v1131, 8.507059e+37
        %v1133 = vand.u32 %v978, 2147483648
        %v1134 = vor.u32 1.1754944e-38, %v1133
        %v1135 = vsel %vm1132, %v1134, %v1130
        %v1136 = vmul.f32 1.0, %v1135
        %v1137 = vrcp.pop %v979
        %v1138 = vmul.f32 %v979, %v1137
        %v1139 = vsub.f32 1.0, %v1138
        %v1140 = vmul.f32 %v1137, %v1139
        %v1141 = vadd.f32 %v1137, %v1140
        %vm1142 = vweird.f32 %v979
        %vm1143 = vweird.f32 %v1137
        %vm1144 = vmor %vm1142, %vm1143
        %v1145 = vsel %vm1144, %v1137, %v1141
        %v1146 = vand.u32 2147483647, %v979
        %vm1147 = vcmp.eq.f32.partialorder %v1146, 8.507059e+37
        %v1148 = vand.u32 %v979, 2147483648
        %v1149 = vor.u32 1.1754944e-38, %v1148
        %v1150 = vsel %vm1147, %v1149, %v1145
        %v1151 = vmul.f32 1.0, %v1150
        %v1152 = vrcp.pop %v980
        %v1153 = vmul.f32 %v980, %v1152
        %v1154 = vsub.f32 1.0, %v1153
        %v1155 = vmul.f32 %v1152, %v1154
        %v1156 = vadd.f32 %v1152, %v1155
        %vm1157 = vweird.f32 %v980
        %vm1158 = vweird.f32 %v1152
        %vm1159 = vmor %vm1157, %vm1158
        %v1160 = vsel %vm1159, %v1152, %v1156
        %v1161 = vand.u32 2147483647, %v980
        %vm1162 = vcmp.eq.f32.partialorder %v1161, 8.507059e+37
        %v1163 = vand.u32 %v980, 2147483648
        %v1164 = vor.u32 1.1754944e-38, %v1163
        %v1165 = vsel %vm1162, %v1164, %v1160
        %v1166 = vmul.f32 1.0, %v1165
        %v1167 = vrcp.pop %v981
        %v1168 = vmul.f32 %v981, %v1167
        %v1169 = vsub.f32 1.0, %v1168
        %v1170 = vmul.f32 %v1167, %v1169
        %v1171 = vadd.f32 %v1167, %v1170
        %vm1172 = vweird.f32 %v981
        %vm1173 = vweird.f32 %v1167
        %vm1174 = vmor %vm1172, %vm1173
        %v1175 = vsel %vm1174, %v1167, %v1171
        %v1176 = vand.u32 2147483647, %v981
        %vm1177 = vcmp.eq.f32.partialorder %v1176, 8.507059e+37
        %v1178 = vand.u32 %v981, 2147483648
        %v1179 = vor.u32 1.1754944e-38, %v1178
        %v1180 = vsel %vm1177, %v1179, %v1175
        %v1181 = vmul.f32 1.0, %v1180
        %v1182 = vrcp.pop %v982
        %v1183 = vmul.f32 %v982, %v1182
        %v1184 = vsub.f32 1.0, %v1183
        %v1185 = vmul.f32 %v1182, %v1184
        %v1186 = vadd.f32 %v1182, %v1185
        %vm1187 = vweird.f32 %v982
        %vm1188 = vweird.f32 %v1182
        %vm1189 = vmor %vm1187, %vm1188
        %v1190 = vsel %vm1189, %v1182, %v1186
        %v1191 = vand.u32 2147483647, %v982
        %vm1192 = vcmp.eq.f32.partialorder %v1191, 8.507059e+37
        %v1193 = vand.u32 %v982, 2147483648
        %v1194 = vor.u32 1.1754944e-38, %v1193
        %v1195 = vsel %vm1192, %v1194, %v1190
        %v1196 = vmul.f32 1.0, %v1195
        %v1197 = vrcp.pop %v983
        %v1198 = vmul.f32 %v983, %v1197
        %v1199 = vsub.f32 1.0, %v1198
        %v1200 = vmul.f32 %v1197, %v1199
        %v1201 = vadd.f32 %v1197, %v1200
        %vm1202 = vweird.f32 %v983
        %vm1203 = vweird.f32 %v1197
        %vm1204 = vmor %vm1202, %vm1203
        %v1205 = vsel %vm1204, %v1197, %v1201
        %v1206 = vand.u32 2147483647, %v983
        %vm1207 = vcmp.eq.f32.partialorder %v1206, 8.507059e+37
        %v1208 = vand.u32 %v983, 2147483648
        %v1209 = vor.u32 1.1754944e-38, %v1208
        %v1210 = vsel %vm1207, %v1209, %v1205
        %v1211 = vmul.f32 1.0, %v1210
        %v1212 = vrcp.pop %v984
        %v1213 = vmul.f32 %v984, %v1212
        %v1214 = vsub.f32 1.0, %v1213
        %v1215 = vmul.f32 %v1212, %v1214
        %v1216 = vadd.f32 %v1212, %v1215
        %vm1217 = vweird.f32 %v984
        %vm1218 = vweird.f32 %v1212
        %vm1219 = vmor %vm1217, %vm1218
        %v1220 = vsel %vm1219, %v1212, %v1216
        %v1221 = vand.u32 2147483647, %v984
        %vm1222 = vcmp.eq.f32.partialorder %v1221, 8.507059e+37
        %v1223 = vand.u32 %v984, 2147483648
        %v1224 = vor.u32 1.1754944e-38, %v1223
        %v1225 = vsel %vm1222, %v1224, %v1220
        %v1226 = vmul.f32 1.0, %v1225
        %v1227 = vrcp.pop %v985
        %v1228 = vmul.f32 %v985, %v1227
        %v1229 = vsub.f32 1.0, %v1228
        %v1230 = vmul.f32 %v1227, %v1229
        %v1231 = vadd.f32 %v1227, %v1230
        %vm1232 = vweird.f32 %v985
        %vm1233 = vweird.f32 %v1227
        %vm1234 = vmor %vm1232, %vm1233
        %v1235 = vsel %vm1234, %v1227, %v1231
        %v1236 = vand.u32 2147483647, %v985
        %vm1237 = vcmp.eq.f32.partialorder %v1236, 8.507059e+37
        %v1238 = vand.u32 %v985, 2147483648
        %v1239 = vor.u32 1.1754944e-38, %v1238
        %v1240 = vsel %vm1237, %v1239, %v1235
        %v1241 = vmul.f32 1.0, %v1240
        %v1242 = vrcp.pop %v986
        %v1243 = vmul.f32 %v986, %v1242
        %v1244 = vsub.f32 1.0, %v1243
        %v1245 = vmul.f32 %v1242, %v1244
        %v1246 = vadd.f32 %v1242, %v1245
        %vm1247 = vweird.f32 %v986
        %vm1248 = vweird.f32 %v1242
        %vm1249 = vmor %vm1247, %vm1248
        %v1250 = vsel %vm1249, %v1242, %v1246
        %v1251 = vand.u32 2147483647, %v986
        %vm1252 = vcmp.eq.f32.partialorder %v1251, 8.507059e+37
        %v1253 = vand.u32 %v986, 2147483648
        %v1254 = vor.u32 1.1754944e-38, %v1253
        %v1255 = vsel %vm1252, %v1254, %v1250
        %v1256 = vmul.f32 1.0, %v1255
        %v1257 = vrcp.pop %v987
        %v1258 = vmul.f32 %v987, %v1257
        %v1259 = vsub.f32 1.0, %v1258
        %v1260 = vmul.f32 %v1257, %v1259
        %v1261 = vadd.f32 %v1257, %v1260
        %vm1262 = vweird.f32 %v987
        %vm1263 = vweird.f32 %v1257
        %vm1264 = vmor %vm1262, %vm1263
        %v1265 = vsel %vm1264, %v1257, %v1261
        %v1266 = vand.u32 2147483647, %v987
        %vm1267 = vcmp.eq.f32.partialorder %v1266, 8.507059e+37
        %v1268 = vand.u32 %v987, 2147483648
        %v1269 = vor.u32 1.1754944e-38, %v1268
        %v1270 = vsel %vm1267, %v1269, %v1265
        %v1271 = vmul.f32 1.0, %v1270
        %v1272 = vrcp.pop %v988
        %v1273 = vmul.f32 %v988, %v1272
        %v1274 = vsub.f32 1.0, %v1273
        %v1275 = vmul.f32 %v1272, %v1274
        %v1276 = vadd.f32 %v1272, %v1275
        %vm1277 = vweird.f32 %v988
        %vm1278 = vweird.f32 %v1272
        %vm1279 = vmor %vm1277, %vm1278
        %v1280 = vsel %vm1279, %v1272, %v1276
        %v1281 = vand.u32 2147483647, %v988
        %vm1282 = vcmp.eq.f32.partialorder %v1281, 8.507059e+37
        %v1283 = vand.u32 %v988, 2147483648
        %v1284 = vor.u32 1.1754944e-38, %v1283
        %v1285 = vsel %vm1282, %v1284, %v1280
        %v1286 = vmul.f32 1.0, %v1285
        %v1287 = vrcp.pop %v989
        %v1288 = vmul.f32 %v989, %v1287
        %v1289 = vsub.f32 1.0, %v1288
        %v1290 = vmul.f32 %v1287, %v1289
        %v1291 = vadd.f32 %v1287, %v1290
        %vm1292 = vweird.f32 %v989
        %vm1293 = vweird.f32 %v1287
        %vm1294 = vmor %vm1292, %vm1293
        %v1295 = vsel %vm1294, %v1287, %v1291
        %v1296 = vand.u32 2147483647, %v989
        %vm1297 = vcmp.eq.f32.partialorder %v1296, 8.507059e+37
        %v1298 = vand.u32 %v989, 2147483648
        %v1299 = vor.u32 1.1754944e-38, %v1298
        %v1300 = vsel %vm1297, %v1299, %v1295
        %v1301 = vmul.f32 1.0, %v1300
        %v1302 = vrcp.pop %v990
        %v1303 = vmul.f32 %v990, %v1302
        %v1304 = vsub.f32 1.0, %v1303
        %v1305 = vmul.f32 %v1302, %v1304
        %v1306 = vadd.f32 %v1302, %v1305
        %vm1307 = vweird.f32 %v990
        %vm1308 = vweird.f32 %v1302
        %vm1309 = vmor %vm1307, %vm1308
        %v1310 = vsel %vm1309, %v1302, %v1306
        %v1311 = vand.u32 2147483647, %v990
        %vm1312 = vcmp.eq.f32.partialorder %v1311, 8.507059e+37
        %v1313 = vand.u32 %v990, 2147483648
        %v1314 = vor.u32 1.1754944e-38, %v1313
        %v1315 = vsel %vm1312, %v1314, %v1310
        %v1316 = vmul.f32 1.0, %v1315
        %v1317 = vrcp.pop %v991
        %v1318 = vmul.f32 %v991, %v1317
        %v1319 = vsub.f32 1.0, %v1318
        %v1320 = vmul.f32 %v1317, %v1319
        %v1321 = vadd.f32 %v1317, %v1320
        %vm1322 = vweird.f32 %v991
        %vm1323 = vweird.f32 %v1317
        %vm1324 = vmor %vm1322, %vm1323
        %v1325 = vsel %vm1324, %v1317, %v1321
        %v1326 = vand.u32 2147483647, %v991
        %vm1327 = vcmp.eq.f32.partialorder %v1326, 8.507059e+37
        %v1328 = vand.u32 %v991, 2147483648
        %v1329 = vor.u32 1.1754944e-38, %v1328
        %v1330 = vsel %vm1327, %v1329, %v1325
        %v1331 = vmul.f32 1.0, %v1330
        %v1332 = vrcp.pop %v992
        %v1333 = vmul.f32 %v992, %v1332
        %v1334 = vsub.f32 1.0, %v1333
        %v1335 = vmul.f32 %v1332, %v1334
        %v1336 = vadd.f32 %v1332, %v1335
        %vm1337 = vweird.f32 %v992
        %vm1338 = vweird.f32 %v1332
        %vm1339 = vmor %vm1337, %vm1338
        %v1340 = vsel %vm1339, %v1332, %v1336
        %v1341 = vand.u32 2147483647, %v992
        %vm1342 = vcmp.eq.f32.partialorder %v1341, 8.507059e+37
        %v1343 = vand.u32 %v992, 2147483648
        %v1344 = vor.u32 1.1754944e-38, %v1343
        %v1345 = vsel %vm1342, %v1344, %v1340
        %v1346 = vmul.f32 1.0, %v1345
        %v1347 = vrcp.pop %v993
        %v1348 = vmul.f32 %v993, %v1347
        %v1349 = vsub.f32 1.0, %v1348
        %v1350 = vmul.f32 %v1347, %v1349
        %v1351 = vadd.f32 %v1347, %v1350
        %vm1352 = vweird.f32 %v993
        %vm1353 = vweird.f32 %v1347
        %vm1354 = vmor %vm1352, %vm1353
        %v1355 = vsel %vm1354, %v1347, %v1351
        %v1356 = vand.u32 2147483647, %v993
        %vm1357 = vcmp.eq.f32.partialorder %v1356, 8.507059e+37
        %v1358 = vand.u32 %v993, 2147483648
        %v1359 = vor.u32 1.1754944e-38, %v1358
        %v1360 = vsel %vm1357, %v1359, %v1355
        %v1361 = vmul.f32 1.0, %v1360
        %v1362 = vrcp.pop %v994
        %v1363 = vmul.f32 %v994, %v1362
        %v1364 = vsub.f32 1.0, %v1363
        %v1365 = vmul.f32 %v1362, %v1364
        %v1366 = vadd.f32 %v1362, %v1365
        %vm1367 = vweird.f32 %v994
        %vm1368 = vweird.f32 %v1362
        %vm1369 = vmor %vm1367, %vm1368
        %v1370 = vsel %vm1369, %v1362, %v1366
        %v1371 = vand.u32 2147483647, %v994
        %vm1372 = vcmp.eq.f32.partialorder %v1371, 8.507059e+37
        %v1373 = vand.u32 %v994, 2147483648
        %v1374 = vor.u32 1.1754944e-38, %v1373
        %v1375 = vsel %vm1372, %v1374, %v1370
        %v1376 = vmul.f32 1.0, %v1375
        %v1377 = vrcp.pop %v995
        %v1378 = vmul.f32 %v995, %v1377
        %v1379 = vsub.f32 1.0, %v1378
        %v1380 = vmul.f32 %v1377, %v1379
        %v1381 = vadd.f32 %v1377, %v1380
        %vm1382 = vweird.f32 %v995
        %vm1383 = vweird.f32 %v1377
        %vm1384 = vmor %vm1382, %vm1383
        %v1385 = vsel %vm1384, %v1377, %v1381
        %v1386 = vand.u32 2147483647, %v995
        %vm1387 = vcmp.eq.f32.partialorder %v1386, 8.507059e+37
        %v1388 = vand.u32 %v995, 2147483648
        %v1389 = vor.u32 1.1754944e-38, %v1388
        %v1390 = vsel %vm1387, %v1389, %v1385
        %v1391 = vmul.f32 1.0, %v1390
        %v1392 = vrcp.pop %v996
        %v1393 = vmul.f32 %v996, %v1392
        %v1394 = vsub.f32 1.0, %v1393
        %v1395 = vmul.f32 %v1392, %v1394
        %v1396 = vadd.f32 %v1392, %v1395
        %vm1397 = vweird.f32 %v996
        %vm1398 = vweird.f32 %v1392
        %vm1399 = vmor %vm1397, %vm1398
        %v1400 = vsel %vm1399, %v1392, %v1396
        %v1401 = vand.u32 2147483647, %v996
        %vm1402 = vcmp.eq.f32.partialorder %v1401, 8.507059e+37
        %v1403 = vand.u32 %v996, 2147483648
        %v1404 = vor.u32 1.1754944e-38, %v1403
        %v1405 = vsel %vm1402, %v1404, %v1400
        %v1406 = vmul.f32 1.0, %v1405
        %v1407 = vrcp.pop %v997
        %v1408 = vmul.f32 %v997, %v1407
        %v1409 = vsub.f32 1.0, %v1408
        %v1410 = vmul.f32 %v1407, %v1409
        %v1411 = vadd.f32 %v1407, %v1410
        %vm1412 = vweird.f32 %v997
        %vm1413 = vweird.f32 %v1407
        %vm1414 = vmor %vm1412, %vm1413
        %v1415 = vsel %vm1414, %v1407, %v1411
        %v1416 = vand.u32 2147483647, %v997
        %vm1417 = vcmp.eq.f32.partialorder %v1416, 8.507059e+37
        %v1418 = vand.u32 %v997, 2147483648
        %v1419 = vor.u32 1.1754944e-38, %v1418
        %v1420 = vsel %vm1417, %v1419, %v1415
        %v1421 = vmul.f32 1.0, %v1420
        %v1422 = vrcp.pop %v998
        %v1423 = vmul.f32 %v998, %v1422
        %v1424 = vsub.f32 1.0, %v1423
        %v1425 = vmul.f32 %v1422, %v1424
        %v1426 = vadd.f32 %v1422, %v1425
        %vm1427 = vweird.f32 %v998
        %vm1428 = vweird.f32 %v1422
        %vm1429 = vmor %vm1427, %vm1428
        %v1430 = vsel %vm1429, %v1422, %v1426
        %v1431 = vand.u32 2147483647, %v998
        %vm1432 = vcmp.eq.f32.partialorder %v1431, 8.507059e+37
        %v1433 = vand.u32 %v998, 2147483648
        %v1434 = vor.u32 1.1754944e-38, %v1433
        %v1435 = vsel %vm1432, %v1434, %v1430
        %v1436 = vmul.f32 1.0, %v1435
        %v1437 = vrcp.pop %v999
        %v1438 = vmul.f32 %v999, %v1437
        %v1439 = vsub.f32 1.0, %v1438
        %v1440 = vmul.f32 %v1437, %v1439
        %v1441 = vadd.f32 %v1437, %v1440
        %vm1442 = vweird.f32 %v999
        %vm1443 = vweird.f32 %v1437
        %vm1444 = vmor %vm1442, %vm1443
        %v1445 = vsel %vm1444, %v1437, %v1441
        %v1446 = vand.u32 2147483647, %v999
        %vm1447 = vcmp.eq.f32.partialorder %v1446, 8.507059e+37
        %v1448 = vand.u32 %v999, 2147483648
        %v1449 = vor.u32 1.1754944e-38, %v1448
        %v1450 = vsel %vm1447, %v1449, %v1445
        %v1451 = vmul.f32 1.0, %v1450
        %v1452 = vrcp.pop %v1000
        %v1453 = vmul.f32 %v1000, %v1452
        %v1454 = vsub.f32 1.0, %v1453
        %v1455 = vmul.f32 %v1452, %v1454
        %v1456 = vadd.f32 %v1452, %v1455
        %vm1457 = vweird.f32 %v1000
        %vm1458 = vweird.f32 %v1452
        %vm1459 = vmor %vm1457, %vm1458
        %v1460 = vsel %vm1459, %v1452, %v1456
        %v1461 = vand.u32 2147483647, %v1000
        %vm1462 = vcmp.eq.f32.partialorder %v1461, 8.507059e+37
        %v1463 = vand.u32 %v1000, 2147483648
        %v1464 = vor.u32 1.1754944e-38, %v1463
        %v1465 = vsel %vm1462, %v1464, %v1460
        %v1466 = vmul.f32 1.0, %v1465
        %v1467 = vrcp.pop %v1001
        %v1468 = vmul.f32 %v1001, %v1467
        %v1469 = vsub.f32 1.0, %v1468
        %v1470 = vmul.f32 %v1467, %v1469
        %v1471 = vadd.f32 %v1467, %v1470
        %vm1472 = vweird.f32 %v1001
        %vm1473 = vweird.f32 %v1467
        %vm1474 = vmor %vm1472, %vm1473
        %v1475 = vsel %vm1474, %v1467, %v1471
        %v1476 = vand.u32 2147483647, %v1001
        %vm1477 = vcmp.eq.f32.partialorder %v1476, 8.507059e+37
        %v1478 = vand.u32 %v1001, 2147483648
        %v1479 = vor.u32 1.1754944e-38, %v1478
        %v1480 = vsel %vm1477, %v1479, %v1475
        %v1481 = vmul.f32 1.0, %v1480
        %v1482 = vmul.f32 %v1016, %v779
        %v1483 = vmul.f32 %v1031, %v782
        %v1484 = vmul.f32 %v1046, %v785
        %v1485 = vmul.f32 %v1061, %v788
        %v1486 = vmul.f32 %v1076, %v791
        %v1487 = vmul.f32 %v1091, %v794
        %v1488 = vmul.f32 %v1106, %v797
        %v1489 = vmul.f32 %v1121, %v800
        %v1490 = vmul.f32 %v1136, %v803
        %v1491 = vmul.f32 %v1151, %v806
        %v1492 = vmul.f32 %v1166, %v809
        %v1493 = vmul.f32 %v1181, %v812
        %v1494 = vmul.f32 %v1196, %v815
        %v1495 = vmul.f32 %v1211, %v818
        %v1496 = vmul.f32 %v1226, %v821
        %v1497 = vmul.f32 %v1241, %v824
        %v1498 = vmul.f32 %v1256, %v827
        %v1499 = vmul.f32 %v1271, %v830
        %v1500 = vmul.f32 %v1286, %v833
        %v1501 = vmul.f32 %v1301, %v836
        %v1502 = vmul.f32 %v1316, %v839
        %v1503 = vmul.f32 %v1331, %v842
        %v1504 = vmul.f32 %v1346, %v845
        %v1505 = vmul.f32 %v1361, %v848
        %v1506 = vmul.f32 %v1376, %v851
        %v1507 = vmul.f32 %v1391, %v854
        %v1508 = vmul.f32 %v1406, %v857
        %v1509 = vmul.f32 %v1421, %v860
        %v1510 = vmul.f32 %v1436, %v863
        %v1511 = vmul.f32 %v1451, %v866
        %v1512 = vmul.f32 %v1466, %v869
        %v1513 = vmul.f32 %v1481, %v872
        %1514 = vst [vmem:[%s283] sm:$0xff] %v1482
        %1515 = vst [vmem:[%s283 + $0x8] sm:$0xff] %v1483
        %1516 = vst [vmem:[%s283 + $0x10] sm:$0xff] %v1484
        %1517 = vst [vmem:[%s283 + $0x18] sm:$0xff] %v1485
        %1518 = vst [vmem:[%s283 + $0x20] sm:$0xff] %v1486
        %1519 = vst [vmem:[%s283 + $0x28] sm:$0xff] %v1487
        %1520 = vst [vmem:[%s283 + $0x30] sm:$0xff] %v1488
        %1521 = vst [vmem:[%s283 + $0x38] sm:$0xff] %v1489
        %1522 = vst [vmem:[%s283 + $0x40] sm:$0xff] %v1490
        %1523 = vst [vmem:[%s283 + $0x48] sm:$0xff] %v1491
        %1524 = vst [vmem:[%s283 + $0x50] sm:$0xff] %v1492
        %1525 = vst [vmem:[%s283 + $0x58] sm:$0xff] %v1493
        %1526 = vst [vmem:[%s283 + $0x60] sm:$0xff] %v1494
        %1527 = vst [vmem:[%s283 + $0x68] sm:$0xff] %v1495
        %1528 = vst [vmem:[%s283 + $0x70] sm:$0xff] %v1496
        %1529 = vst [vmem:[%s283 + $0x78] sm:$0xff] %v1497
        %1530 = vst [vmem:[%s283 + $0x80] sm:$0xff] %v1498
        %1531 = vst [vmem:[%s283 + $0x88] sm:$0xff] %v1499
        %1532 = vst [vmem:[%s283 + $0x90] sm:$0xff] %v1500
        %1533 = vst [vmem:[%s283 + $0x98] sm:$0xff] %v1501
        %1534 = vst [vmem:[%s283 + $0xa0] sm:$0xff] %v1502
        %1535 = vst [vmem:[%s283 + $0xa8] sm:$0xff] %v1503
        %1536 = vst [vmem:[%s283 + $0xb0] sm:$0xff] %v1504
        %1537 = vst [vmem:[%s283 + $0xb8] sm:$0xff] %v1505
        %1538 = vst [vmem:[%s283 + $0xc0] sm:$0xff] %v1506
        %1539 = vst [vmem:[%s283 + $0xc8] sm:$0xff] %v1507
        %1540 = vst [vmem:[%s283 + $0xd0] sm:$0xff] %v1508
        %1541 = vst [vmem:[%s283 + $0xd8] sm:$0xff] %v1509
        %1542 = vst [vmem:[%s283 + $0xe0] sm:$0xff] %v1510
        %1543 = vst [vmem:[%s283 + $0xe8] sm:$0xff] %v1511
        %1544 = vst [vmem:[%s283 + $0xf0] sm:$0xff] %v1512
        %1545 = vst [vmem:[%s283 + $0xf8] sm:$0xff] %v1513
        %s1546 = sand.u32 %s123, 1
        %s1547 = scalar_lea.sflag [#allocation4], %s1546
        %s1548 = sand.u32 %s123, 1
        %s1549 = smul.addr %s1548, 256
        %s1550 = scalar_lea.vmem [#allocation8], %s1549
        // Predicated region
        $region45: #{tpu_custom_call.1} parent=31 // pred_check
          %p1551 = pneg %p133
        $region46: #{tpu_custom_call.1} parent=31 // pred_check_branch
          %1553 = sbr.rel (%p1551) target = $region48
        $region47: #{tpu_custom_call.1} parent=31 // pred_region
          %s1554 = smul.u32 32, %s27
          %1556 = vsyncadd %s1547, 0
          %s1557 = smul.addr %s1554, 2
          %s1558 = sadd.s32 %s28, %s1557
          %s1559 = smul.addr %s1558, 8
          %s1560 = scalar_lea.hbm %s3, %s1559
          %s1561 = sshll.u32 %s1550, 4
          %s1562 = int_to_ptr.vmem [resolvable:$true] %s1561
          %s1563 = sshll.u32 %s1560, 4
          %s1564 = int_to_ptr.hbm [resolvable:$true] %s1563
          %1569 = dma.vmem_to_hbm [thread:$0]  %s1562, 4096, %s1564, %s1547, 128, 256, 8
        $region48: #{tpu_custom_call.1} parent=31 // pred_fallthru
          _
      $region32: #{tpu_custom_call.1} parent=5 // pred_fallthru
        _
      %p1570 = scmp.le.s32.totalorder 2, %s18
      // Predicated region
      $region49: #{tpu_custom_call.1} parent=5 // pred_check
        %p1571 = pneg %p1570
      $region50: #{tpu_custom_call.1} parent=5 // pred_check_branch
        %1573 = sbr.rel (%p1571) target = $region52
      $region51: #{tpu_custom_call.1} parent=5 // pred_region
        %s1574 = ssub.s32 %s18, 2
        // Predicated region
        $region53: #{tpu_custom_call.1} parent=51 // pred_check
          %p1575 = pneg %p139
        $region54: #{tpu_custom_call.1} parent=51 // pred_check_branch
          %1577 = sbr.rel (%p1575) target = $region56
        $region55: #{tpu_custom_call.1} parent=51 // pred_region
          %s1578 = sand.u32 %s124, 1
          %s1579 = scalar_lea.sflag [#allocation4], %s1578
          %s1580 = sand.u32 %s124, 1
          %s1581 = smul.addr %s1580, 256
          %s1582 = scalar_lea.vmem [#allocation8], %s1581
          %1584 = dma.done %s1579, 4096
        $region56: #{tpu_custom_call.1} parent=51 // pred_fallthru
          _
      $region52: #{tpu_custom_call.1} parent=5 // pred_fallthru
        _
    $region6: #{tpu_custom_call.1} parent=1 // loop_footer
      %s22 = sadd.s32 1, %s18
    $region7: #{tpu_custom_call.1} parent=1 // loop_footer_branch
      %17 = sbr.rel target = $region3
    $region8: #{tpu_custom_call.1} parent=1 // loop_exit
      _
    %1585 = vsyncpa [#allocation3], 1
    %s1586 = scalar_lea.sflag [#allocation3], 1
    %1587 = vsyncpa %s1586, 1
    %1588 = vsyncpa [#allocation6], 1
    %s1589 = scalar_lea.sflag [#allocation6], 1
    %1590 = vsyncpa %s1589, 1
    %1591 = vsyncpa [#allocation4], 1
    %s1592 = scalar_lea.sflag [#allocation4], 1
    %1593 = vsyncpa %s1592, 1

</llo_original>
